<compile_context>
chip_gen: v7x
topology: tpu7x:2x2x1
jax: 0.10.0
libtpu: 0.0.40
codegen_flags: <defaults>
</compile_context>

<pallas_src>
import jax
import jax.numpy as jnp
from jax.experimental import pallas as pl
from jax.experimental.pallas import tpu as pltpu

LOG_STD_MIN = -20.0
LOG_STD_MAX = 2.0
LEAKY_SLOPE = 0.01  # torch.nn.LeakyReLU default


def policy_kernel(obs_ref, wfc_ref, bfc_ref, wh_ref, bh_ref, out_ref):
    out_size = out_ref.shape[-1] // 2

    # Hidden layer: x @ W_fc + b_fc, LeakyReLU. Cast activations to the weight
    # dtype (no-op for f32, enables the bf16 MXU path); accumulate in f32.
    x = obs_ref[...].astype(wfc_ref.dtype)
    h = jnp.dot(x, wfc_ref[...], preferred_element_type=jnp.float32) + bfc_ref[...]
    h = jnp.maximum(h, LEAKY_SLOPE * h)          # LeakyReLU (slope in (0,1))

    # Fused heads: single [tb, mid] @ [mid, 2*out] matmul.
    heads = jnp.dot(h.astype(wh_ref.dtype), wh_ref[...],
                    preferred_element_type=jnp.float32) + bh_ref[...]

    mean = heads[:, :out_size]
    log_std = jnp.clip(heads[:, out_size:], LOG_STD_MIN, LOG_STD_MAX)
    std = jnp.exp(log_std)                       # EUP slot, effectively free

    # Lane-dense packed output: [tb, 2*out] = [mean | std].
    out_ref[...] = jnp.concatenate([mean, std], axis=-1).astype(out_ref.dtype)


def _pick_batch_tile(batch):
    """Largest tile <= 256 dividing the batch, preferring >= 2 grid steps."""
    if batch <= 128:
        return batch
    for cand in (256, 128, 64, 32, 16, 8):
        if batch % cand == 0 and batch // cand >= 2:
            return cand
    return batch


def policy_forward(obs, w_fc, b_fc, w_mean, b_mean, w_logv, b_logv, *,
                   tb=None, param_dtype=None,
                   vmem_limit_bytes=32 * 1024 * 1024):
    """obs: [B, obs_size]; weights stored as [in, out]; biases as [1, out]."""
    B, obs_size = obs.shape
    mid_size = w_fc.shape[1]
    out_size = w_mean.shape[1]

    # Fuse the two head projections into a single matmul.
    w_heads = jnp.concatenate([w_mean, w_logv], axis=1)       # [mid, 2*out]
    b_heads = jnp.concatenate([b_mean, b_logv], axis=1)       # [1, 2*out]

    if param_dtype is not None:
        w_fc = w_fc.astype(param_dtype)
        w_heads = w_heads.astype(param_dtype)
        # Biases stay f32: they are added to the f32 MXU accumulators.

    if tb is None:
        tb = _pick_batch_tile(B)
    assert B % tb == 0, f"batch {B} must be divisible by tile {tb}"
    grid = (B // tb,)

    def _call(single_buffer_weights):
        def rep(shape):
            if single_buffer_weights:
                # Constant index_map -> nothing to prefetch; single-buffer to
                # halve weight VMEM (matters at the 1024-wide default sizes).
                return pl.BlockSpec(shape, lambda i: (0, 0),
                                    pipeline_mode=pl.Buffered(1))
            return pl.BlockSpec(shape, lambda i: (0, 0))

        return pl.pallas_call(
            policy_kernel,
            out_shape=jax.ShapeDtypeStruct((B, 2 * out_size), jnp.float32),
            grid=grid,
            in_specs=[
                pl.BlockSpec((tb, obs_size), lambda i: (i, 0)),   # obs tile
                rep((obs_size, mid_size)),                        # W_fc
                rep((1, mid_size)),                               # b_fc
                rep((mid_size, 2 * out_size)),                    # W_heads
                rep((1, 2 * out_size)),                           # b_heads
            ],
            out_specs=pl.BlockSpec((tb, 2 * out_size), lambda i: (i, 0)),
            compiler_params=pltpu.CompilerParams(
                dimension_semantics=("parallel",),
                vmem_limit_bytes=vmem_limit_bytes),
        )(obs, w_fc, b_fc, w_heads, b_heads)

    try:
        packed = _call(True)
    except Exception:
        # Fallback for jax versions where single-buffered BlockSpecs are not
        # supported on this path (default double-buffering; same results).
        packed = _call(False)

    mean = packed[:, :out_size]
    std = packed[:, out_size:]
    return mean, std


def init_params(key, obs_size, mid_size, out_size):
    """Deterministic init mimicking torch.nn.Linear (uniform +/- 1/sqrt(fan_in)).
    Weights stored as [in, out] (transposed w.r.t. PyTorch's [out, in])."""
    ks = jax.random.split(key, 6)

    def lin(kw, kb, fan_in, fan_out):
        bound = 1.0 / jnp.sqrt(fan_in)
        w = jax.random.uniform(kw, (fan_in, fan_out), jnp.float32, -bound, bound)
        b = jax.random.uniform(kb, (1, fan_out), jnp.float32, -bound, bound)
        return w, b

    w_fc, b_fc = lin(ks[0], ks[1], obs_size, mid_size)
    w_mean, b_mean = lin(ks[2], ks[3], mid_size, out_size)
    w_logv, b_logv = lin(ks[4], ks[5], mid_size, out_size)
    return w_fc, b_fc, w_mean, b_mean, w_logv, b_logv


def reference_forward(obs, w_fc, b_fc, w_mean, b_mean, w_logv, b_logv):
    h = obs @ w_fc + b_fc
    h = jnp.where(h > 0, h, LEAKY_SLOPE * h)
    mean = h @ w_mean + b_mean
    log_std = jnp.clip(h @ w_logv + b_logv, LOG_STD_MIN, LOG_STD_MAX)
    return mean, jnp.exp(log_std)


if __name__ == "__main__":
    # Small shapes consistent with the module (defaults are 1024/1024/1024).
    batch, obs_size, mid_size, out_size = 256, 256, 256, 128

    key = jax.random.PRNGKey(0)
    k_obs, k_param = jax.random.split(key)
    obs = jax.random.normal(k_obs, (batch, obs_size), jnp.float32)
    params = init_params(k_param, obs_size, mid_size, out_size)

    # f32 path (default): tight check against the plain-JAX reference.
    mean, std = policy_forward(obs, *params)
    jax.block_until_ready((mean, std))

    mean_ref, std_ref = reference_forward(obs, *params)
    assert mean.shape == (batch, out_size) and std.shape == (batch, out_size)
    assert jnp.allclose(mean, mean_ref, atol=1e-4, rtol=1e-4)
    assert jnp.allclose(std, std_ref, atol=1e-4, rtol=1e-4)
    assert bool(jnp.all(std > 0))

    # bf16-weight fast path (v6e/v7x): f32 accumulation keeps results close.
    mean_bf, std_bf = policy_forward(obs, *params, param_dtype=jnp.bfloat16)
    jax.block_until_ready((mean_bf, std_bf))
    assert bool(jnp.all(jnp.isfinite(mean_bf))) and bool(jnp.all(std_bf > 0))
    assert jnp.allclose(mean_bf, mean_ref, atol=1e-1, rtol=1e-1)
    assert jnp.allclose(std_bf, std_ref, atol=1e-1, rtol=1e-1)

    print("KERNEL_OK")
</pallas_src>

<mosaic_0001>
module attributes {stable_mosaic.version = 11 : i64} {
  func.func @policy_kernel(%arg0: i32, %arg1: memref<128x256xf32, #tpu.memory_space<vmem>>, %arg2: memref<256x256xf32, #tpu.memory_space<vmem>>, %arg3: memref<1x256xf32, #tpu.memory_space<vmem>>, %arg4: memref<256x256xf32, #tpu.memory_space<vmem>>, %arg5: memref<1x256xf32, #tpu.memory_space<vmem>>, %arg6: memref<128x256xf32, #tpu.memory_space<vmem>>) attributes {dimension_semantics = [#tpu.dimension_semantics<parallel>], iteration_bounds = array<i64: 2>, scalar_prefetch = 0 : i64, scratch_operands = 0 : i64, tpu.core_type = #tpu.core_type<tc>, window_params = [{transform_indices = @transform_0, window_bounds = array<i64: 128, 256>}, {pipeline_mode = #tpu.pipeline_mode<synchronous>, transform_indices = @transform_1, window_bounds = array<i64: 256, 256>}, {pipeline_mode = #tpu.pipeline_mode<synchronous>, transform_indices = @transform_2, window_bounds = array<i64: 1, 256>}, {pipeline_mode = #tpu.pipeline_mode<synchronous>, transform_indices = @transform_3, window_bounds = array<i64: 256, 256>}, {pipeline_mode = #tpu.pipeline_mode<synchronous>, transform_indices = @transform_4, window_bounds = array<i64: 1, 256>}, {transform_indices = @transform_5, window_bounds = array<i64: 128, 256>}]} {
    %c0 = arith.constant 0 : index
    %c0_0 = arith.constant 0 : index
    %0 = vector.load %arg1[%c0, %c0_0] : memref<128x256xf32, #tpu.memory_space<vmem>>, vector<128x256xf32>
    %c0_1 = arith.constant 0 : index
    %c0_2 = arith.constant 0 : index
    %1 = vector.load %arg2[%c0_1, %c0_2] : memref<256x256xf32, #tpu.memory_space<vmem>>, vector<256x256xf32>
    %cst = arith.constant dense<0.000000e+00> : vector<128x256xf32>
    %2 = tpu.matmul %0, %1, %cst {dimension_numbers = #tpu.dot_dimension_numbers<[1], [0], [0], [1], [0, 0, 1, 1], [], []>} : vector<128x256xf32>, vector<256x256xf32>, vector<128x256xf32> -> vector<128x256xf32>
    %c0_3 = arith.constant 0 : index
    %c0_4 = arith.constant 0 : index
    %3 = vector.load %arg3[%c0_3, %c0_4] : memref<1x256xf32, #tpu.memory_space<vmem>>, vector<1x256xf32>
    %4 = vector.broadcast %3 : vector<1x256xf32> to vector<128x256xf32>
    %5 = arith.addf %2, %4 : vector<128x256xf32>
    %cst_5 = arith.constant 0.00999999977 : f32
    %6 = vector.broadcast %cst_5 : f32 to vector<128x256xf32>
    %7 = arith.mulf %6, %5 : vector<128x256xf32>
    %8 = arith.maximumf %5, %7 : vector<128x256xf32>
    %c0_6 = arith.constant 0 : index
    %c0_7 = arith.constant 0 : index
    %9 = vector.load %arg4[%c0_6, %c0_7] : memref<256x256xf32, #tpu.memory_space<vmem>>, vector<256x256xf32>
    %cst_8 = arith.constant dense<0.000000e+00> : vector<128x256xf32>
    %10 = tpu.matmul %8, %9, %cst_8 {dimension_numbers = #tpu.dot_dimension_numbers<[1], [0], [0], [1], [0, 0, 1, 1], [], []>} : vector<128x256xf32>, vector<256x256xf32>, vector<128x256xf32> -> vector<128x256xf32>
    %c0_9 = arith.constant 0 : index
    %c0_10 = arith.constant 0 : index
    %11 = vector.load %arg5[%c0_9, %c0_10] : memref<1x256xf32, #tpu.memory_space<vmem>>, vector<1x256xf32>
    %12 = vector.broadcast %11 : vector<1x256xf32> to vector<128x256xf32>
    %13 = arith.addf %10, %12 : vector<128x256xf32>
    %14 = vector.extract_strided_slice %13 {offsets = [0, 0], sizes = [128, 128], strides = [1, 1]} : vector<128x256xf32> to vector<128x128xf32>
    %15 = vector.extract_strided_slice %13 {offsets = [0, 128], sizes = [128, 128], strides = [1, 1]} : vector<128x256xf32> to vector<128x128xf32>
    %cst_11 = arith.constant -2.000000e+01 : f32
    %cst_12 = arith.constant 2.000000e+00 : f32
    %16 = vector.broadcast %cst_11 : f32 to vector<128x128xf32>
    %17 = arith.maximumf %16, %15 : vector<128x128xf32>
    %18 = vector.broadcast %cst_12 : f32 to vector<128x128xf32>
    %19 = arith.minimumf %18, %17 : vector<128x128xf32>
    %20 = math.exp %19 : vector<128x128xf32>
    %21 = tpu.concatenate %14, %20 in 1 : vector<128x128xf32>, vector<128x128xf32> -> vector<128x256xf32>
    %c0_13 = arith.constant 0 : index
    %c0_14 = arith.constant 0 : index
    %22 = vector.load %arg6[%c0_13, %c0_14] : memref<128x256xf32, #tpu.memory_space<vmem>>, vector<128x256xf32>
    tpu.vector_store %arg6[%c0_13, %c0_14], %21 {strides = array<i32>} : memref<128x256xf32, #tpu.memory_space<vmem>>, vector<128x256xf32>,
    return
  }
  func.func @transform_0(%arg0: i32) -> (i32, i32) {
    %c0_i32 = arith.constant 0 : i32
    %c0_i32_0 = arith.constant 0 : i32
    return %arg0, %c0_i32 : i32, i32
  }
  func.func @transform_1(%arg0: i32) -> (i32, i32) {
    %c0_i32 = arith.constant 0 : i32
    %c0_i32_0 = arith.constant 0 : i32
    %c0_i32_1 = arith.constant 0 : i32
    return %c0_i32, %c0_i32_0 : i32, i32
  }
  func.func @transform_2(%arg0: i32) -> (i32, i32) {
    %c0_i32 = arith.constant 0 : i32
    %c0_i32_0 = arith.constant 0 : i32
    %c0_i32_1 = arith.constant 0 : i32
    return %c0_i32, %c0_i32_0 : i32, i32
  }
  func.func @transform_3(%arg0: i32) -> (i32, i32) {
    %c0_i32 = arith.constant 0 : i32
    %c0_i32_0 = arith.constant 0 : i32
    %c0_i32_1 = arith.constant 0 : i32
    return %c0_i32, %c0_i32_0 : i32, i32
  }
  func.func @transform_4(%arg0: i32) -> (i32, i32) {
    %c0_i32 = arith.constant 0 : i32
    %c0_i32_0 = arith.constant 0 : i32
    %c0_i32_1 = arith.constant 0 : i32
    return %c0_i32, %c0_i32_0 : i32, i32
  }
  func.func @transform_5(%arg0: i32) -> (i32, i32) {
    %c0_i32 = arith.constant 0 : i32
    %c0_i32_0 = arith.constant 0 : i32
    return %arg0, %c0_i32 : i32, i32
  }
}

module attributes {stable_mosaic.version = 11 : i64} {
  func.func @policy_kernel(%arg0: i32, %arg1: memref<128x256xf32, #tpu.memory_space<vmem>>, %arg2: memref<256x256xf32, #tpu.memory_space<vmem>>, %arg3: memref<1x256xf32, #tpu.memory_space<vmem>>, %arg4: memref<256x256xf32, #tpu.memory_space<vmem>>, %arg5: memref<1x256xf32, #tpu.memory_space<vmem>>, %arg6: memref<128x256xf32, #tpu.memory_space<vmem>>) attributes {dimension_semantics = [#tpu.dimension_semantics<parallel>], iteration_bounds = array<i64: 2>, scalar_prefetch = 0 : i64, scratch_operands = 0 : i64, tpu.core_type = #tpu.core_type<tc>, window_params = [{transform_indices = @transform_0, window_bounds = array<i64: 128, 256>}, {pipeline_mode = #tpu.pipeline_mode<synchronous>, transform_indices = @transform_1, window_bounds = array<i64: 256, 256>}, {pipeline_mode = #tpu.pipeline_mode<synchronous>, transform_indices = @transform_2, window_bounds = array<i64: 1, 256>}, {pipeline_mode = #tpu.pipeline_mode<synchronous>, transform_indices = @transform_3, window_bounds = array<i64: 256, 256>}, {pipeline_mode = #tpu.pipeline_mode<synchronous>, transform_indices = @transform_4, window_bounds = array<i64: 1, 256>}, {transform_indices = @transform_5, window_bounds = array<i64: 128, 256>}]} {
    %c0 = arith.constant 0 : index
    %c0_0 = arith.constant 0 : index
    %0 = vector.load %arg1[%c0, %c0_0] : memref<128x256xf32, #tpu.memory_space<vmem>>, vector<128x256xf32>
    %c0_1 = arith.constant 0 : index
    %c0_2 = arith.constant 0 : index
    %1 = vector.load %arg2[%c0_1, %c0_2] : memref<256x256xf32, #tpu.memory_space<vmem>>, vector<256x256xf32>
    %cst = arith.constant dense<0.000000e+00> : vector<128x256xf32>
    %2 = tpu.matmul %0, %1, %cst {dimension_numbers = #tpu.dot_dimension_numbers<[1], [0], [0], [1], [0, 0, 1, 1], [], []>} : vector<128x256xf32>, vector<256x256xf32>, vector<128x256xf32> -> vector<128x256xf32>
    %c0_3 = arith.constant 0 : index
    %c0_4 = arith.constant 0 : index
    %3 = vector.load %arg3[%c0_3, %c0_4] : memref<1x256xf32, #tpu.memory_space<vmem>>, vector<1x256xf32>
    %4 = vector.broadcast %3 : vector<1x256xf32> to vector<128x256xf32>
    %5 = arith.addf %2, %4 : vector<128x256xf32>
    %cst_5 = arith.constant 0.00999999977 : f32
    %6 = vector.broadcast %cst_5 : f32 to vector<128x256xf32>
    %7 = arith.mulf %6, %5 : vector<128x256xf32>
    %8 = arith.maximumf %5, %7 : vector<128x256xf32>
    %c0_6 = arith.constant 0 : index
    %c0_7 = arith.constant 0 : index
    %9 = vector.load %arg4[%c0_6, %c0_7] : memref<256x256xf32, #tpu.memory_space<vmem>>, vector<256x256xf32>
    %cst_8 = arith.constant dense<0.000000e+00> : vector<128x256xf32>
    %10 = tpu.matmul %8, %9, %cst_8 {dimension_numbers = #tpu.dot_dimension_numbers<[1], [0], [0], [1], [0, 0, 1, 1], [], []>} : vector<128x256xf32>, vector<256x256xf32>, vector<128x256xf32> -> vector<128x256xf32>
    %c0_9 = arith.constant 0 : index
    %c0_10 = arith.constant 0 : index
    %11 = vector.load %arg5[%c0_9, %c0_10] : memref<1x256xf32, #tpu.memory_space<vmem>>, vector<1x256xf32>
    %12 = vector.broadcast %11 : vector<1x256xf32> to vector<128x256xf32>
    %13 = arith.addf %10, %12 : vector<128x256xf32>
    %14 = vector.extract_strided_slice %13 {offsets = [0, 0], sizes = [128, 128], strides = [1, 1]} : vector<128x256xf32> to vector<128x128xf32>
    %15 = vector.extract_strided_slice %13 {offsets = [0, 128], sizes = [128, 128], strides = [1, 1]} : vector<128x256xf32> to vector<128x128xf32>
    %cst_11 = arith.constant -2.000000e+01 : f32
    %cst_12 = arith.constant 2.000000e+00 : f32
    %16 = vector.broadcast %cst_11 : f32 to vector<128x128xf32>
    %17 = arith.maximumf %16, %15 : vector<128x128xf32>
    %18 = vector.broadcast %cst_12 : f32 to vector<128x128xf32>
    %19 = arith.minimumf %18, %17 : vector<128x128xf32>
    %20 = math.exp %19 : vector<128x128xf32>
    %21 = tpu.concatenate %14, %20 in 1 : vector<128x128xf32>, vector<128x128xf32> -> vector<128x256xf32>
    %c0_13 = arith.constant 0 : index
    %c0_14 = arith.constant 0 : index
    %22 = vector.load %arg6[%c0_13, %c0_14] : memref<128x256xf32, #tpu.memory_space<vmem>>, vector<128x256xf32>
    tpu.vector_store %arg6[%c0_13, %c0_14], %21 {strides = array<i32>} : memref<128x256xf32, #tpu.memory_space<vmem>>, vector<128x256xf32>,
    return
  }
  func.func @transform_0(%arg0: i32) -> (i32, i32) {
    %c0_i32 = arith.constant 0 : i32
    %c0_i32_0 = arith.constant 0 : i32
    return %arg0, %c0_i32 : i32, i32
  }
  func.func @transform_1(%arg0: i32) -> (i32, i32) {
    %c0_i32 = arith.constant 0 : i32
    %c0_i32_0 = arith.constant 0 : i32
    %c0_i32_1 = arith.constant 0 : i32
    return %c0_i32, %c0_i32_0 : i32, i32
  }
  func.func @transform_2(%arg0: i32) -> (i32, i32) {
    %c0_i32 = arith.constant 0 : i32
    %c0_i32_0 = arith.constant 0 : i32
    %c0_i32_1 = arith.constant 0 : i32
    return %c0_i32, %c0_i32_0 : i32, i32
  }
  func.func @transform_3(%arg0: i32) -> (i32, i32) {
    %c0_i32 = arith.constant 0 : i32
    %c0_i32_0 = arith.constant 0 : i32
    %c0_i32_1 = arith.constant 0 : i32
    return %c0_i32, %c0_i32_0 : i32, i32
  }
  func.func @transform_4(%arg0: i32) -> (i32, i32) {
    %c0_i32 = arith.constant 0 : i32
    %c0_i32_0 = arith.constant 0 : i32
    %c0_i32_1 = arith.constant 0 : i32
    return %c0_i32, %c0_i32_0 : i32, i32
  }
  func.func @transform_5(%arg0: i32) -> (i32, i32) {
    %c0_i32 = arith.constant 0 : i32
    %c0_i32_0 = arith.constant 0 : i32
    return %arg0, %c0_i32 : i32, i32
  }
}

</mosaic_0001>

<llo_original>
// kernel: tpu_custom_call.1
$region0: #{tpu_custom_call.1}
  #allocation0 [shape = 'u32[]', space=smem, size = 0x4, offset = 0x4, fixed_abs, tag = 'smem constant byte address 0x4 - core index']
  #allocation1 [shape = 'u32[144,128]{1,0:T(1,128)}', space=vmem, size = 0x12000, scoped, tag = 'internal scratch']
  %s0 = inlined_call_operand.hbm [shape: f32[256,256], index: 0, kind: input, shape index: {}]
  %s1 = inlined_call_operand.hbm [shape: f32[256,256], index: 1, kind: input, shape index: {}]
  %s2 = inlined_call_operand.vmem [shape: f32[1,256], index: 2, kind: input, shape index: {}]
  %s3 = inlined_call_operand.hbm [shape: f32[256,256], index: 3, kind: input, shape index: {}]
  %s4 = inlined_call_operand.vmem [shape: f32[1,256], index: 4, kind: input, shape index: {}]
  %s5 = inlined_call_operand.hbm [shape: f32[256,256], index: 5, kind: output, shape index: {}]
  %s6 = sld [smem:[#allocation0]]
  $region65: #{tpu_custom_call.1} parent=0
    _
  %s8 = ssub.s32 1, %s6
  %s9 = scalar_select 0, %s8, %s6
  $region1: #{tpu_custom_call.1} parent=0
    #allocation2 [shape = 'u8[262144]{0}', space=vmem, size = 0x40000, scoped, tag = 'input window, operand 0']
    #allocation3 [shape = 's32[2]{0}', space=sflag, size = 0x8, scoped, tag = 'scoped memory for tpu_custom_call.1']
    #allocation4 [shape = 's32[2]{0}', space=sflag, size = 0x8, scoped, tag = 'scoped memory for tpu_custom_call.1']
    #allocation5 [shape = 'u8[262144]{0}', space=vmem, size = 0x40000, scoped, tag = 'input window, operand 1, single buffered']
    #allocation6 [shape = 's32[1]{0}', space=sflag, size = 0x4, scoped, tag = 'scoped memory for tpu_custom_call.1']
    #allocation7 [shape = 'u8[262144]{0}', space=vmem, size = 0x40000, scoped, tag = 'input window, operand 3, single buffered']
    #allocation8 [shape = 'u8[262144]{0}', space=vmem, size = 0x40000, scoped, tag = 'output window, operand 0']
    %10 = vsyncpa [#allocation3], 0
    %s11 = scalar_lea.sflag [#allocation3], 1
    %12 = vsyncpa %s11, 0
    %13 = vsyncpa [#allocation6], 0
    %14 = vsyncpa [#allocation4], 0
    %s15 = scalar_lea.sflag [#allocation4], 1
    %16 = vsyncpa %s15, 0
    loop: start=0, step=1, limit=4
    $region2: #{tpu_custom_call.1} parent=1 // loop_pre_header
      _
    $region3: #{tpu_custom_call.1} parent=1 // loop_header
      %s18 = sphi 0, %s22
      %p19 = scmp.ge.s32.totalorder %s18, 4
      %s28 = sphi 0, %s30
      %s31 = sphi 0, %s28
      %s32 = sphi 0, %s31
      %s48 = sphi 0, %s32
      %s52 = sphi 0, %s52
      %s54 = sphi 0, %s52
      %s55 = sphi 0, %s54
      %s69 = sphi 0, %s55
      %s73 = sphi 0, %s73
      %s75 = sphi 0, %s73
      %s76 = sphi 0, %s75
      %s90 = sphi 0, %s76
      %s94 = sphi 0, %s94
      %s96 = sphi 0, %s94
      %s97 = sphi 0, %s96
      %s111 = sphi 0, %s97
      %s115 = sphi 0, %s115
      %s117 = sphi 0, %s115
      %s118 = sphi 0, %s117
      %s132 = sphi 0, %s118
      %s138 = sphi 0, %s140
      %s141 = sphi 0, %s138
      %s142 = sphi 0, %s141
      %s158 = sphi 0, %s142
    $region4: #{tpu_custom_call.1} parent=1 // loop_header_branch
      %21 = sbr.rel (%p19) target = $region8
    $region5: #{tpu_custom_call.1} parent=1 // loop_body
      %s23 = ssub.s32 %s18, 1
      %s24 = ssub.s32 %s18, 2
      %s25 = sadd.s32 %s18, 1
      %s26 = ssub.s32 %s18, %s25
      %p27 = scmp.eq.s32.totalorder %s26, 0
      %s29 = sadd.s32 %s28, 1
      %s30 = scalar_select %p27, %s28, %s29
      %p33 = pneg %p27
      %p34 = scmp.eq.s32.totalorder %s18, 1
      %p35 = por %p33, %p34
      %p36 = scmp.ne.s32.totalorder %s28, %s31
      %p37 = scmp.eq.s32.totalorder %s18, 0
      %p38 = por %p36, %p37
      %p39 = scmp.ne.s32.totalorder %s28, %s31
      %p40 = scmp.eq.s32.totalorder %s23, 1
      %p41 = por %p39, %p40
      %p42 = scmp.ne.s32.totalorder %s31, %s32
      %p43 = scmp.eq.s32.totalorder %s23, 0
      %p44 = por %p42, %p43
      %p45 = scmp.ne.s32.totalorder %s31, %s32
      %p46 = scmp.eq.s32.totalorder %s24, 1
      %p47 = por %p45, %p46
      %p49 = scmp.ne.s32.totalorder %s32, %s48
      %p50 = scmp.eq.s32.totalorder %s24, 0
      %p51 = por %p49, %p50
      %s53 = sadd.s32 %s52, 1
      %p56 = scmp.eq.s32.totalorder %s18, 1
      %p57 = scmp.ne.s32.totalorder %s52, %s54
      %p58 = scmp.eq.s32.totalorder %s18, 0
      %p59 = por %p57, %p58
      %p60 = scmp.ne.s32.totalorder %s52, %s54
      %p61 = scmp.eq.s32.totalorder %s23, 1
      %p62 = por %p60, %p61
      %p63 = scmp.ne.s32.totalorder %s54, %s55
      %p64 = scmp.eq.s32.totalorder %s23, 0
      %p65 = por %p63, %p64
      %p66 = scmp.ne.s32.totalorder %s54, %s55
      %p67 = scmp.eq.s32.totalorder %s24, 1
      %p68 = por %p66, %p67
      %p70 = scmp.ne.s32.totalorder %s55, %s69
      %p71 = scmp.eq.s32.totalorder %s24, 0
      %p72 = por %p70, %p71
      %s74 = sadd.s32 %s73, 1
      %p77 = scmp.eq.s32.totalorder %s18, 1
      %p78 = scmp.ne.s32.totalorder %s73, %s75
      %p79 = scmp.eq.s32.totalorder %s18, 0
      %p80 = por %p78, %p79
      %p81 = scmp.ne.s32.totalorder %s73, %s75
      %p82 = scmp.eq.s32.totalorder %s23, 1
      %p83 = por %p81, %p82
      %p84 = scmp.ne.s32.totalorder %s75, %s76
      %p85 = scmp.eq.s32.totalorder %s23, 0
      %p86 = por %p84, %p85
      %p87 = scmp.ne.s32.totalorder %s75, %s76
      %p88 = scmp.eq.s32.totalorder %s24, 1
      %p89 = por %p87, %p88
      %p91 = scmp.ne.s32.totalorder %s76, %s90
      %p92 = scmp.eq.s32.totalorder %s24, 0
      %p93 = por %p91, %p92
      %s95 = sadd.s32 %s94, 1
      %p98 = scmp.eq.s32.totalorder %s18, 1
      %p99 = scmp.ne.s32.totalorder %s94, %s96
      %p100 = scmp.eq.s32.totalorder %s18, 0
      %p101 = por %p99, %p100
      %p102 = scmp.ne.s32.totalorder %s94, %s96
      %p103 = scmp.eq.s32.totalorder %s23, 1
      %p104 = por %p102, %p103
      %p105 = scmp.ne.s32.totalorder %s96, %s97
      %p106 = scmp.eq.s32.totalorder %s23, 0
      %p107 = por %p105, %p106
      %p108 = scmp.ne.s32.totalorder %s96, %s97
      %p109 = scmp.eq.s32.totalorder %s24, 1
      %p110 = por %p108, %p109
      %p112 = scmp.ne.s32.totalorder %s97, %s111
      %p113 = scmp.eq.s32.totalorder %s24, 0
      %p114 = por %p112, %p113
      %s116 = sadd.s32 %s115, 1
      %p119 = scmp.eq.s32.totalorder %s18, 1
      %p120 = scmp.ne.s32.totalorder %s115, %s117
      %p121 = scmp.eq.s32.totalorder %s18, 0
      %p122 = por %p120, %p121
      %p123 = scmp.ne.s32.totalorder %s115, %s117
      %p124 = scmp.eq.s32.totalorder %s23, 1
      %p125 = por %p123, %p124
      %p126 = scmp.ne.s32.totalorder %s117, %s118
      %p127 = scmp.eq.s32.totalorder %s23, 0
      %p128 = por %p126, %p127
      %p129 = scmp.ne.s32.totalorder %s117, %s118
      %p130 = scmp.eq.s32.totalorder %s24, 1
      %p131 = por %p129, %p130
      %p133 = scmp.ne.s32.totalorder %s118, %s132
      %p134 = scmp.eq.s32.totalorder %s24, 0
      %p135 = por %p133, %p134
      %s136 = ssub.s32 %s18, %s25
      %p137 = scmp.eq.s32.totalorder %s136, 0
      %s139 = sadd.s32 %s138, 1
      %s140 = scalar_select %p137, %s138, %s139
      %p143 = pneg %p137
      %p144 = scmp.eq.s32.totalorder %s18, 1
      %p145 = por %p143, %p144
      %p146 = scmp.ne.s32.totalorder %s138, %s141
      %p147 = scmp.eq.s32.totalorder %s18, 0
      %p148 = por %p146, %p147
      %p149 = scmp.ne.s32.totalorder %s138, %s141
      %p150 = scmp.eq.s32.totalorder %s23, 1
      %p151 = por %p149, %p150
      %p152 = scmp.ne.s32.totalorder %s141, %s142
      %p153 = scmp.eq.s32.totalorder %s23, 0
      %p154 = por %p152, %p153
      %p155 = scmp.ne.s32.totalorder %s141, %s142
      %p156 = scmp.eq.s32.totalorder %s24, 1
      %p157 = por %p155, %p156
      %p159 = scmp.ne.s32.totalorder %s142, %s158
      %p160 = scmp.eq.s32.totalorder %s24, 0
      %p161 = por %p159, %p160
      %p162 = scmp.le.s32.totalorder 1, %s18
      %p163 = scmp.lt.s32.totalorder %s18, 3
      %p164 = pnand %p162, %p163
      %p165 = pneg %p164
      // Predicated region
      $region9: #{tpu_custom_call.1} parent=5 // pred_check
        _
      $region10: #{tpu_custom_call.1} parent=5 // pred_check_branch
        %167 = sbr.rel (%p164) target = $region12
      $region11: #{tpu_custom_call.1} parent=5 // pred_region
        %s168 = ssub.s32 %s18, 1
        // Predicated region
        $region13: #{tpu_custom_call.1} parent=11 // pred_check
          %p169 = pneg %p65
        $region14: #{tpu_custom_call.1} parent=11 // pred_check_branch
          %171 = sbr.rel (%p169) target = $region16
        $region15: #{tpu_custom_call.1} parent=11 // pred_region
          %s173 = ssub.s32 8192, 8192
          %174 = vsyncadd [#allocation6], %s173
          %s175 = sshll.u32 [#allocation5], 4
          %s176 = int_to_ptr.vmem [resolvable:$true] %s175
          %181 = dma.hbm_to_vmem [thread:$0]  %s1, 8192, %s176, [#allocation6], 256, 256, 16
        $region16: #{tpu_custom_call.1} parent=11 // pred_fallthru
          _
        // Predicated region
        $region17: #{tpu_custom_call.1} parent=11 // pred_check
          %p182 = pneg %p86
        $region18: #{tpu_custom_call.1} parent=11 // pred_check_branch
          %184 = sbr.rel (%p182) target = $region20
        $region19: #{tpu_custom_call.1} parent=11 // pred_region
          _
        $region20: #{tpu_custom_call.1} parent=11 // pred_fallthru
          _
        // Predicated region
        $region21: #{tpu_custom_call.1} parent=11 // pred_check
          %p185 = pneg %p107
        $region22: #{tpu_custom_call.1} parent=11 // pred_check_branch
          %187 = sbr.rel (%p185) target = $region24
        $region23: #{tpu_custom_call.1} parent=11 // pred_region
          %s189 = ssub.s32 8192, 8192
          %190 = vsyncadd [#allocation6], %s189
          %s191 = sshll.u32 [#allocation7], 4
          %s192 = int_to_ptr.vmem [resolvable:$true] %s191
          %197 = dma.hbm_to_vmem [thread:$0]  %s3, 8192, %s192, [#allocation6], 256, 256, 16
        $region24: #{tpu_custom_call.1} parent=11 // pred_fallthru
          _
        // Predicated region
        $region25: #{tpu_custom_call.1} parent=11 // pred_check
          %p198 = pneg %p128
        $region26: #{tpu_custom_call.1} parent=11 // pred_check_branch
          %200 = sbr.rel (%p198) target = $region28
        $region27: #{tpu_custom_call.1} parent=11 // pred_region
          _
        $region28: #{tpu_custom_call.1} parent=11 // pred_fallthru
          _
      $region12: #{tpu_custom_call.1} parent=5 // pred_fallthru
        _
      %p201 = scmp.lt.s32.totalorder %s18, 2
      // Predicated region
      $region29: #{tpu_custom_call.1} parent=5 // pred_check
        %p202 = pneg %p201
      $region30: #{tpu_custom_call.1} parent=5 // pred_check_branch
        %204 = sbr.rel (%p202) target = $region32
      $region31: #{tpu_custom_call.1} parent=5 // pred_region
        // Predicated region
        $region33: #{tpu_custom_call.1} parent=31 // pred_check
          %p205 = pneg %p38
        $region34: #{tpu_custom_call.1} parent=31 // pred_check_branch
          %207 = sbr.rel (%p205) target = $region36
        $region35: #{tpu_custom_call.1} parent=31 // pred_region
          %s208 = sand.u32 %s28, 1
          %s209 = scalar_lea.sflag [#allocation3], %s208
          %s210 = sand.u32 %s28, 1
          %s211 = smul.addr %s210, 256
          %s212 = scalar_lea.vmem [#allocation2], %s211
          %s213 = smul.u32 16, %s18
          %s215 = ssub.s32 4096, 4096
          %216 = vsyncadd %s209, %s215
          %s217 = smul.addr %s213, 2
          %s218 = smul.addr %s217, 128
          %s219 = scalar_lea.hbm %s0, %s218
          %s220 = sshll.u32 %s212, 4
          %s221 = int_to_ptr.vmem [resolvable:$true] %s220
          %226 = dma.hbm_to_vmem [thread:$0]  %s219, 4096, %s221, %s209, 256, 256, 16
        $region36: #{tpu_custom_call.1} parent=31 // pred_fallthru
          _
      $region32: #{tpu_custom_call.1} parent=5 // pred_fallthru
        _
      %p227 = scmp.le.s32.totalorder 1, %s18
      %p228 = scmp.lt.s32.totalorder %s18, 3
      %p229 = pnand %p227, %p228
      %p230 = pneg %p229
      // Predicated region
      $region37: #{tpu_custom_call.1} parent=5 // pred_check
        _
      $region38: #{tpu_custom_call.1} parent=5 // pred_check_branch
        %232 = sbr.rel (%p229) target = $region40
      $region39: #{tpu_custom_call.1} parent=5 // pred_region
        %s233 = ssub.s32 %s18, 1
        %s234 = sand.u32 %s31, 1
        %s235 = scalar_lea.sflag [#allocation3], %s234
        %s236 = sand.u32 %s31, 1
        %s237 = smul.addr %s236, 256
        %s238 = scalar_lea.vmem [#allocation2], %s237
        // Predicated region
        $region41: #{tpu_custom_call.1} parent=39 // pred_check
          %p239 = pneg %p44
        $region42: #{tpu_custom_call.1} parent=39 // pred_check_branch
          %241 = sbr.rel (%p239) target = $region44
        $region43: #{tpu_custom_call.1} parent=39 // pred_region
          %242 = dma.done %s235, 4096
        $region44: #{tpu_custom_call.1} parent=39 // pred_fallthru
          _
        // Predicated region
        $region45: #{tpu_custom_call.1} parent=39 // pred_check
          %p243 = pneg %p65
        $region46: #{tpu_custom_call.1} parent=39 // pred_check_branch
          %245 = sbr.rel (%p243) target = $region48
        $region47: #{tpu_custom_call.1} parent=39 // pred_region
          %246 = dma.done [#allocation6], 8192
        $region48: #{tpu_custom_call.1} parent=39 // pred_fallthru
          _
        // Predicated region
        $region49: #{tpu_custom_call.1} parent=39 // pred_check
          %p247 = pneg %p107
        $region50: #{tpu_custom_call.1} parent=39 // pred_check_branch
          %249 = sbr.rel (%p247) target = $region52
        $region51: #{tpu_custom_call.1} parent=39 // pred_region
          %250 = dma.done [#allocation6], 8192
        $region52: #{tpu_custom_call.1} parent=39 // pred_fallthru
          _
        %s251 = sand.u32 %s31, 1
        %s252 = scalar_lea.sflag [#allocation3], %s251
        %s253 = sand.u32 %s31, 1
        %s254 = smul.addr %s253, 256
        %s255 = scalar_lea.vmem [#allocation2], %s254
        %p256 = pneg %p44
        %p257 = pneg %p41
        %p258 = pneg %p65
        %p259 = pneg %p62
        %p260 = pneg %p86
        %p261 = pneg %p83
        %p262 = pneg %p107
        %p263 = pneg %p104
        %p264 = pneg %p128
        %p265 = pneg %p125
        %p266 = pneg %p154
        %p267 = pneg %p151
        %s268 = sand.u32 %s141, 1
        %s269 = scalar_lea.sflag [#allocation4], %s268
        %s270 = sand.u32 %s141, 1
        %s271 = smul.addr %s270, 256
        %s272 = scalar_lea.vmem [#allocation8], %s271
        %s273 = smul.u32 16, %s23
        %s274 = smul.u32 16, %s23
        %v275 = vld [vmem:[%s238] sm:$0xff]
        %v276 = vld [vmem:[%s238 + $0x8] sm:$0xff]
        %v277 = vld [vmem:[%s238 + $0x10] sm:$0xff]
        %v278 = vld [vmem:[%s238 + $0x18] sm:$0xff]
        %v279 = vld [vmem:[%s238 + $0x20] sm:$0xff]
        %v280 = vld [vmem:[%s238 + $0x28] sm:$0xff]
        %v281 = vld [vmem:[%s238 + $0x30] sm:$0xff]
        %v282 = vld [vmem:[%s238 + $0x38] sm:$0xff]
        %v283 = vld [vmem:[%s238 + $0x40] sm:$0xff]
        %v284 = vld [vmem:[%s238 + $0x48] sm:$0xff]
        %v285 = vld [vmem:[%s238 + $0x50] sm:$0xff]
        %v286 = vld [vmem:[%s238 + $0x58] sm:$0xff]
        %v287 = vld [vmem:[%s238 + $0x60] sm:$0xff]
        %v288 = vld [vmem:[%s238 + $0x68] sm:$0xff]
        %v289 = vld [vmem:[%s238 + $0x70] sm:$0xff]
        %v290 = vld [vmem:[%s238 + $0x78] sm:$0xff]
        %v291 = vld [vmem:[%s238 + $0x80] sm:$0xff]
        %v292 = vld [vmem:[%s238 + $0x88] sm:$0xff]
        %v293 = vld [vmem:[%s238 + $0x90] sm:$0xff]
        %v294 = vld [vmem:[%s238 + $0x98] sm:$0xff]
        %v295 = vld [vmem:[%s238 + $0xa0] sm:$0xff]
        %v296 = vld [vmem:[%s238 + $0xa8] sm:$0xff]
        %v297 = vld [vmem:[%s238 + $0xb0] sm:$0xff]
        %v298 = vld [vmem:[%s238 + $0xb8] sm:$0xff]
        %v299 = vld [vmem:[%s238 + $0xc0] sm:$0xff]
        %v300 = vld [vmem:[%s238 + $0xc8] sm:$0xff]
        %v301 = vld [vmem:[%s238 + $0xd0] sm:$0xff]
        %v302 = vld [vmem:[%s238 + $0xd8] sm:$0xff]
        %v303 = vld [vmem:[%s238 + $0xe0] sm:$0xff]
        %v304 = vld [vmem:[%s238 + $0xe8] sm:$0xff]
        %v305 = vld [vmem:[%s238 + $0xf0] sm:$0xff]
        %v306 = vld [vmem:[%s238 + $0xf8] sm:$0xff]
        %v307 = vld [vmem:[#allocation5] sm:$0xff]
        %v308 = vld [vmem:[#allocation5 + $0x8] sm:$0xff]
        %v309 = vld [vmem:[#allocation5 + $0x10] sm:$0xff]
        %v310 = vld [vmem:[#allocation5 + $0x18] sm:$0xff]
        %v311 = vld [vmem:[#allocation5 + $0x20] sm:$0xff]
        %v312 = vld [vmem:[#allocation5 + $0x28] sm:$0xff]
        %v313 = vld [vmem:[#allocation5 + $0x30] sm:$0xff]
        %v314 = vld [vmem:[#allocation5 + $0x38] sm:$0xff]
        %v315 = vld [vmem:[#allocation5 + $0x40] sm:$0xff]
        %v316 = vld [vmem:[#allocation5 + $0x48] sm:$0xff]
        %v317 = vld [vmem:[#allocation5 + $0x50] sm:$0xff]
        %v318 = vld [vmem:[#allocation5 + $0x58] sm:$0xff]
        %v319 = vld [vmem:[#allocation5 + $0x60] sm:$0xff]
        %v320 = vld [vmem:[#allocation5 + $0x68] sm:$0xff]
        %v321 = vld [vmem:[#allocation5 + $0x70] sm:$0xff]
        %v322 = vld [vmem:[#allocation5 + $0x78] sm:$0xff]
        %v323 = vld [vmem:[#allocation5 + $0x80] sm:$0xff]
        %v324 = vld [vmem:[#allocation5 + $0x88] sm:$0xff]
        %v325 = vld [vmem:[#allocation5 + $0x90] sm:$0xff]
        %v326 = vld [vmem:[#allocation5 + $0x98] sm:$0xff]
        %v327 = vld [vmem:[#allocation5 + $0xa0] sm:$0xff]
        %v328 = vld [vmem:[#allocation5 + $0xa8] sm:$0xff]
        %v329 = vld [vmem:[#allocation5 + $0xb0] sm:$0xff]
        %v330 = vld [vmem:[#allocation5 + $0xb8] sm:$0xff]
        %v331 = vld [vmem:[#allocation5 + $0xc0] sm:$0xff]
        %v332 = vld [vmem:[#allocation5 + $0xc8] sm:$0xff]
        %v333 = vld [vmem:[#allocation5 + $0xd0] sm:$0xff]
        %v334 = vld [vmem:[#allocation5 + $0xd8] sm:$0xff]
        %v335 = vld [vmem:[#allocation5 + $0xe0] sm:$0xff]
        %v336 = vld [vmem:[#allocation5 + $0xe8] sm:$0xff]
        %v337 = vld [vmem:[#allocation5 + $0xf0] sm:$0xff]
        %v338 = vld [vmem:[#allocation5 + $0xf8] sm:$0xff]
        %v339 = vld [vmem:[#allocation5 + $0x100] sm:$0xff]
        %v340 = vld [vmem:[#allocation5 + $0x108] sm:$0xff]
        %v341 = vld [vmem:[#allocation5 + $0x110] sm:$0xff]
        %v342 = vld [vmem:[#allocation5 + $0x118] sm:$0xff]
        %v343 = vld [vmem:[#allocation5 + $0x120] sm:$0xff]
        %v344 = vld [vmem:[#allocation5 + $0x128] sm:$0xff]
        %v345 = vld [vmem:[#allocation5 + $0x130] sm:$0xff]
        %v346 = vld [vmem:[#allocation5 + $0x138] sm:$0xff]
        %v347 = vld [vmem:[#allocation5 + $0x140] sm:$0xff]
        %v348 = vld [vmem:[#allocation5 + $0x148] sm:$0xff]
        %v349 = vld [vmem:[#allocation5 + $0x150] sm:$0xff]
        %v350 = vld [vmem:[#allocation5 + $0x158] sm:$0xff]
        %v351 = vld [vmem:[#allocation5 + $0x160] sm:$0xff]
        %v352 = vld [vmem:[#allocation5 + $0x168] sm:$0xff]
        %v353 = vld [vmem:[#allocation5 + $0x170] sm:$0xff]
        %v354 = vld [vmem:[#allocation5 + $0x178] sm:$0xff]
        %v355 = vld [vmem:[#allocation5 + $0x180] sm:$0xff]
        %v356 = vld [vmem:[#allocation5 + $0x188] sm:$0xff]
        %v357 = vld [vmem:[#allocation5 + $0x190] sm:$0xff]
        %v358 = vld [vmem:[#allocation5 + $0x198] sm:$0xff]
        %v359 = vld [vmem:[#allocation5 + $0x1a0] sm:$0xff]
        %v360 = vld [vmem:[#allocation5 + $0x1a8] sm:$0xff]
        %v361 = vld [vmem:[#allocation5 + $0x1b0] sm:$0xff]
        %v362 = vld [vmem:[#allocation5 + $0x1b8] sm:$0xff]
        %v363 = vld [vmem:[#allocation5 + $0x1c0] sm:$0xff]
        %v364 = vld [vmem:[#allocation5 + $0x1c8] sm:$0xff]
        %v365 = vld [vmem:[#allocation5 + $0x1d0] sm:$0xff]
        %v366 = vld [vmem:[#allocation5 + $0x1d8] sm:$0xff]
        %v367 = vld [vmem:[#allocation5 + $0x1e0] sm:$0xff]
        %v368 = vld [vmem:[#allocation5 + $0x1e8] sm:$0xff]
        %v369 = vld [vmem:[#allocation5 + $0x1f0] sm:$0xff]
        %v370 = vld [vmem:[#allocation5 + $0x1f8] sm:$0xff]
        %v371 = vld [vmem:[%s2] sm:$0x3]
        %v373 = vlaneseq
        %v374 = vshrl.u32 %v373, 7
        %v375 = vsub.s32 0, %v374
        %v376 = vrot.slane %v371, %v375
        %v377 = vlaneseq
        %v378 = vshrl.u32 %v377, 7
        %v379 = vsub.s32 1, %v378
        %v380 = vrot.slane %v371, %v379
        %383 = vmatprep.subr.mxu0 %v308
        %384 = vmatpush1.msra.mxu0 %v307
        %385 = vmatprep.subr.mxu0 %v310
        %386 = vmatpush1.msra.mxu0 %v309
        %387 = vmatprep.subr.mxu0 %v312
        %388 = vmatpush1.msra.mxu0 %v311
        %389 = vmatprep.subr.mxu0 %v314
        %390 = vmatpush1.msra.mxu0 %v313
        %391 = vmatprep.subr.mxu0 %v316
        %392 = vmatpush1.msra.mxu0 %v315
        %393 = vmatprep.subr.mxu0 %v318
        %394 = vmatpush1.msra.mxu0 %v317
        %395 = vmatprep.subr.mxu0 %v320
        %396 = vmatpush1.msra.mxu0 %v319
        %397 = vmatprep.subr.mxu0 %v322
        %398 = vmatpush1.msra.mxu0 %v321
        %399 = vmatprep.subr.mxu0 %v324
        %400 = vmatpush1.msra.mxu0 %v323
        %401 = vmatprep.subr.mxu0 %v326
        %402 = vmatpush1.msra.mxu0 %v325
        %403 = vmatprep.subr.mxu0 %v328
        %404 = vmatpush1.msra.mxu0 %v327
        %405 = vmatprep.subr.mxu0 %v330
        %406 = vmatpush1.msra.mxu0 %v329
        %407 = vmatprep.subr.mxu0 %v332
        %408 = vmatpush1.msra.mxu0 %v331
        %409 = vmatprep.subr.mxu0 %v334
        %410 = vmatpush1.msra.mxu0 %v333
        %411 = vmatprep.subr.mxu0 %v336
        %412 = vmatpush1.msra.mxu0 %v335
        %413 = vmatprep.subr.mxu0 %v338
        %414 = vmatpush1.msra.mxu0 %v337
        %415 = vmatprep.subr.mxu0 %v340
        %416 = vmatpush1.msra.mxu0 %v339
        %417 = vmatprep.subr.mxu0 %v342
        %418 = vmatpush1.msra.mxu0 %v341
        %419 = vmatprep.subr.mxu0 %v344
        %420 = vmatpush1.msra.mxu0 %v343
        %421 = vmatprep.subr.mxu0 %v346
        %422 = vmatpush1.msra.mxu0 %v345
        %423 = vmatprep.subr.mxu0 %v348
        %424 = vmatpush1.msra.mxu0 %v347
        %425 = vmatprep.subr.mxu0 %v350
        %426 = vmatpush1.msra.mxu0 %v349
        %427 = vmatprep.subr.mxu0 %v352
        %428 = vmatpush1.msra.mxu0 %v351
        %429 = vmatprep.subr.mxu0 %v354
        %430 = vmatpush1.msra.mxu0 %v353
        %431 = vmatprep.subr.mxu0 %v356
        %432 = vmatpush1.msra.mxu0 %v355
        %433 = vmatprep.subr.mxu0 %v358
        %434 = vmatpush1.msra.mxu0 %v357
        %435 = vmatprep.subr.mxu0 %v360
        %436 = vmatpush1.msra.mxu0 %v359
        %437 = vmatprep.subr.mxu0 %v362
        %438 = vmatpush1.msra.mxu0 %v361
        %439 = vmatprep.subr.mxu0 %v364
        %440 = vmatpush1.msra.mxu0 %v363
        %441 = vmatprep.subr.mxu0 %v366
        %442 = vmatpush1.msra.mxu0 %v365
        %443 = vmatprep.subr.mxu0 %v368
        %444 = vmatpush1.msra.mxu0 %v367
        %445 = vmatprep.subr.mxu0 %v370
        %446 = vmatpush1.msra.mxu0 %v369
        %447 = vmatprep.mubr.f32.mxu0 %v276
        %448 = vmatmul.mubr.f32.gmra.mrb[0].mxu0 %v275
        %v449 = vpop.f32.mrb[0].mxu0
        %v450 = vadd.f32 %v376, %v449
        %v451 = vpop.f32.mrb[0].mxu0
        %v452 = vadd.f32 %v380, %v451
        %453 = vmatprep.mubr.f32.mxu0 %v278
        %454 = vmatmul.mubr.f32.gmra.mrb[0].mxu0 %v277
        %v455 = vpop.f32.mrb[0].mxu0
        %v456 = vadd.f32 %v376, %v455
        %v457 = vpop.f32.mrb[0].mxu0
        %v458 = vadd.f32 %v380, %v457
        %459 = vmatprep.mubr.f32.mxu0 %v280
        %460 = vmatmul.mubr.f32.gmra.mrb[0].mxu0 %v279
        %v461 = vpop.f32.mrb[0].mxu0
        %v462 = vadd.f32 %v376, %v461
        %v463 = vpop.f32.mrb[0].mxu0
        %v464 = vadd.f32 %v380, %v463
        %465 = vmatprep.mubr.f32.mxu0 %v282
        %466 = vmatmul.mubr.f32.gmra.mrb[0].mxu0 %v281
        %v467 = vpop.f32.mrb[0].mxu0
        %v468 = vadd.f32 %v376, %v467
        %v469 = vpop.f32.mrb[0].mxu0
        %v470 = vadd.f32 %v380, %v469
        %471 = vmatprep.mubr.f32.mxu0 %v284
        %472 = vmatmul.mubr.f32.gmra.mrb[0].mxu0 %v283
        %v473 = vpop.f32.mrb[0].mxu0
        %v474 = vadd.f32 %v376, %v473
        %v475 = vpop.f32.mrb[0].mxu0
        %v476 = vadd.f32 %v380, %v475
        %477 = vmatprep.mubr.f32.mxu0 %v286
        %478 = vmatmul.mubr.f32.gmra.mrb[0].mxu0 %v285
        %v479 = vpop.f32.mrb[0].mxu0
        %v480 = vadd.f32 %v376, %v479
        %v481 = vpop.f32.mrb[0].mxu0
        %v482 = vadd.f32 %v380, %v481
        %483 = vmatprep.mubr.f32.mxu0 %v288
        %484 = vmatmul.mubr.f32.gmra.mrb[0].mxu0 %v287
        %v485 = vpop.f32.mrb[0].mxu0
        %v486 = vadd.f32 %v376, %v485
        %v487 = vpop.f32.mrb[0].mxu0
        %v488 = vadd.f32 %v380, %v487
        %489 = vmatprep.mubr.f32.mxu0 %v290
        %490 = vmatmul.mubr.f32.gmra.mrb[0].mxu0 %v289
        %v491 = vpop.f32.mrb[0].mxu0
        %v492 = vadd.f32 %v376, %v491
        %v493 = vpop.f32.mrb[0].mxu0
        %v494 = vadd.f32 %v380, %v493
        %495 = vmatprep.mubr.f32.mxu0 %v292
        %496 = vmatmul.mubr.f32.gmra.mrb[0].mxu0 %v291
        %v497 = vpop.f32.mrb[0].mxu0
        %v498 = vadd.f32 %v376, %v497
        %v499 = vpop.f32.mrb[0].mxu0
        %v500 = vadd.f32 %v380, %v499
        %501 = vmatprep.mubr.f32.mxu0 %v294
        %502 = vmatmul.mubr.f32.gmra.mrb[0].mxu0 %v293
        %v503 = vpop.f32.mrb[0].mxu0
        %v504 = vadd.f32 %v376, %v503
        %v505 = vpop.f32.mrb[0].mxu0
        %v506 = vadd.f32 %v380, %v505
        %507 = vmatprep.mubr.f32.mxu0 %v296
        %508 = vmatmul.mubr.f32.gmra.mrb[0].mxu0 %v295
        %v509 = vpop.f32.mrb[0].mxu0
        %v510 = vadd.f32 %v376, %v509
        %v511 = vpop.f32.mrb[0].mxu0
        %v512 = vadd.f32 %v380, %v511
        %513 = vmatprep.mubr.f32.mxu0 %v298
        %514 = vmatmul.mubr.f32.gmra.mrb[0].mxu0 %v297
        %v515 = vpop.f32.mrb[0].mxu0
        %v516 = vadd.f32 %v376, %v515
        %v517 = vpop.f32.mrb[0].mxu0
        %v518 = vadd.f32 %v380, %v517
        %519 = vmatprep.mubr.f32.mxu0 %v300
        %520 = vmatmul.mubr.f32.gmra.mrb[0].mxu0 %v299
        %v521 = vpop.f32.mrb[0].mxu0
        %v522 = vadd.f32 %v376, %v521
        %v523 = vpop.f32.mrb[0].mxu0
        %v524 = vadd.f32 %v380, %v523
        %525 = vmatprep.mubr.f32.mxu0 %v302
        %526 = vmatmul.mubr.f32.gmra.mrb[0].mxu0 %v301
        %v527 = vpop.f32.mrb[0].mxu0
        %v528 = vadd.f32 %v376, %v527
        %v529 = vpop.f32.mrb[0].mxu0
        %v530 = vadd.f32 %v380, %v529
        %531 = vmatprep.mubr.f32.mxu0 %v304
        %532 = vmatmul.mubr.f32.gmra.mrb[0].mxu0 %v303
        %v533 = vpop.f32.mrb[0].mxu0
        %v534 = vadd.f32 %v376, %v533
        %v535 = vpop.f32.mrb[0].mxu0
        %v536 = vadd.f32 %v380, %v535
        %537 = vmatprep.mubr.f32.mxu0 %v306
        %538 = vmatmul.mubr.f32.gmra.mrb[0].mxu0 %v305
        %v539 = vpop.f32.mrb[0].mxu0
        %v540 = vadd.f32 %v376, %v539
        %v541 = vpop.f32.mrb[0].mxu0
        %v542 = vadd.f32 %v380, %v541
        %543 = vdwg.mxu0
        %v544 = vmul.f32 %v450, 0.01
        %v545 = vmul.f32 %v452, 0.01
        %v546 = vmul.f32 %v456, 0.01
        %v547 = vmul.f32 %v458, 0.01
        %v548 = vmul.f32 %v462, 0.01
        %v549 = vmul.f32 %v464, 0.01
        %v550 = vmul.f32 %v468, 0.01
        %v551 = vmul.f32 %v470, 0.01
        %v552 = vmul.f32 %v474, 0.01
        %v553 = vmul.f32 %v476, 0.01
        %v554 = vmul.f32 %v480, 0.01
        %v555 = vmul.f32 %v482, 0.01
        %v556 = vmul.f32 %v486, 0.01
        %v557 = vmul.f32 %v488, 0.01
        %v558 = vmul.f32 %v492, 0.01
        %v559 = vmul.f32 %v494, 0.01
        %v560 = vmul.f32 %v498, 0.01
        %v561 = vmul.f32 %v500, 0.01
        %v562 = vmul.f32 %v504, 0.01
        %v563 = vmul.f32 %v506, 0.01
        %v564 = vmul.f32 %v510, 0.01
        %v565 = vmul.f32 %v512, 0.01
        %v566 = vmul.f32 %v516, 0.01
        %v567 = vmul.f32 %v518, 0.01
        %v568 = vmul.f32 %v522, 0.01
        %v569 = vmul.f32 %v524, 0.01
        %v570 = vmul.f32 %v528, 0.01
        %v571 = vmul.f32 %v530, 0.01
        %v572 = vmul.f32 %v534, 0.01
        %v573 = vmul.f32 %v536, 0.01
        %v574 = vmul.f32 %v540, 0.01
        %v575 = vmul.f32 %v542, 0.01
        %v576 = vmax.f32 %v450, %v544
        %v577 = vmax.f32 %v452, %v545
        %v578 = vmax.f32 %v456, %v546
        %v579 = vmax.f32 %v458, %v547
        %v580 = vmax.f32 %v462, %v548
        %v581 = vmax.f32 %v464, %v549
        %v582 = vmax.f32 %v468, %v550
        %v583 = vmax.f32 %v470, %v551
        %v584 = vmax.f32 %v474, %v552
        %v585 = vmax.f32 %v476, %v553
        %v586 = vmax.f32 %v480, %v554
        %v587 = vmax.f32 %v482, %v555
        %v588 = vmax.f32 %v486, %v556
        %v589 = vmax.f32 %v488, %v557
        %v590 = vmax.f32 %v492, %v558
        %v591 = vmax.f32 %v494, %v559
        %v592 = vmax.f32 %v498, %v560
        %v593 = vmax.f32 %v500, %v561
        %v594 = vmax.f32 %v504, %v562
        %v595 = vmax.f32 %v506, %v563
        %v596 = vmax.f32 %v510, %v564
        %v597 = vmax.f32 %v512, %v565
        %v598 = vmax.f32 %v516, %v566
        %v599 = vmax.f32 %v518, %v567
        %v600 = vmax.f32 %v522, %v568
        %v601 = vmax.f32 %v524, %v569
        %v602 = vmax.f32 %v528, %v570
        %v603 = vmax.f32 %v530, %v571
        %v604 = vmax.f32 %v534, %v572
        %v605 = vmax.f32 %v536, %v573
        %v606 = vmax.f32 %v540, %v574
        %v607 = vmax.f32 %v542, %v575
        %v608 = vld [vmem:[#allocation7] sm:$0xff]
        %v609 = vld [vmem:[#allocation7 + $0x8] sm:$0xff]
        %v610 = vld [vmem:[#allocation7 + $0x10] sm:$0xff]
        %v611 = vld [vmem:[#allocation7 + $0x18] sm:$0xff]
        %v612 = vld [vmem:[#allocation7 + $0x20] sm:$0xff]
        %v613 = vld [vmem:[#allocation7 + $0x28] sm:$0xff]
        %v614 = vld [vmem:[#allocation7 + $0x30] sm:$0xff]
        %v615 = vld [vmem:[#allocation7 + $0x38] sm:$0xff]
        %v616 = vld [vmem:[#allocation7 + $0x40] sm:$0xff]
        %v617 = vld [vmem:[#allocation7 + $0x48] sm:$0xff]
        %v618 = vld [vmem:[#allocation7 + $0x50] sm:$0xff]
        %v619 = vld [vmem:[#allocation7 + $0x58] sm:$0xff]
        %v620 = vld [vmem:[#allocation7 + $0x60] sm:$0xff]
        %v621 = vld [vmem:[#allocation7 + $0x68] sm:$0xff]
        %v622 = vld [vmem:[#allocation7 + $0x70] sm:$0xff]
        %v623 = vld [vmem:[#allocation7 + $0x78] sm:$0xff]
        %v624 = vld [vmem:[#allocation7 + $0x80] sm:$0xff]
        %v625 = vld [vmem:[#allocation7 + $0x88] sm:$0xff]
        %v626 = vld [vmem:[#allocation7 + $0x90] sm:$0xff]
        %v627 = vld [vmem:[#allocation7 + $0x98] sm:$0xff]
        %v628 = vld [vmem:[#allocation7 + $0xa0] sm:$0xff]
        %v629 = vld [vmem:[#allocation7 + $0xa8] sm:$0xff]
        %v630 = vld [vmem:[#allocation7 + $0xb0] sm:$0xff]
        %v631 = vld [vmem:[#allocation7 + $0xb8] sm:$0xff]
        %v632 = vld [vmem:[#allocation7 + $0xc0] sm:$0xff]
        %v633 = vld [vmem:[#allocation7 + $0xc8] sm:$0xff]
        %v634 = vld [vmem:[#allocation7 + $0xd0] sm:$0xff]
        %v635 = vld [vmem:[#allocation7 + $0xd8] sm:$0xff]
        %v636 = vld [vmem:[#allocation7 + $0xe0] sm:$0xff]
        %v637 = vld [vmem:[#allocation7 + $0xe8] sm:$0xff]
        %v638 = vld [vmem:[#allocation7 + $0xf0] sm:$0xff]
        %v639 = vld [vmem:[#allocation7 + $0xf8] sm:$0xff]
        %v640 = vld [vmem:[#allocation7 + $0x100] sm:$0xff]
        %v641 = vld [vmem:[#allocation7 + $0x108] sm:$0xff]
        %v642 = vld [vmem:[#allocation7 + $0x110] sm:$0xff]
        %v643 = vld [vmem:[#allocation7 + $0x118] sm:$0xff]
        %v644 = vld [vmem:[#allocation7 + $0x120] sm:$0xff]
        %v645 = vld [vmem:[#allocation7 + $0x128] sm:$0xff]
        %v646 = vld [vmem:[#allocation7 + $0x130] sm:$0xff]
        %v647 = vld [vmem:[#allocation7 + $0x138] sm:$0xff]
        %v648 = vld [vmem:[#allocation7 + $0x140] sm:$0xff]
        %v649 = vld [vmem:[#allocation7 + $0x148] sm:$0xff]
        %v650 = vld [vmem:[#allocation7 + $0x150] sm:$0xff]
        %v651 = vld [vmem:[#allocation7 + $0x158] sm:$0xff]
        %v652 = vld [vmem:[#allocation7 + $0x160] sm:$0xff]
        %v653 = vld [vmem:[#allocation7 + $0x168] sm:$0xff]
        %v654 = vld [vmem:[#allocation7 + $0x170] sm:$0xff]
        %v655 = vld [vmem:[#allocation7 + $0x178] sm:$0xff]
        %v656 = vld [vmem:[#allocation7 + $0x180] sm:$0xff]
        %v657 = vld [vmem:[#allocation7 + $0x188] sm:$0xff]
        %v658 = vld [vmem:[#allocation7 + $0x190] sm:$0xff]
        %v659 = vld [vmem:[#allocation7 + $0x198] sm:$0xff]
        %v660 = vld [vmem:[#allocation7 + $0x1a0] sm:$0xff]
        %v661 = vld [vmem:[#allocation7 + $0x1a8] sm:$0xff]
        %v662 = vld [vmem:[#allocation7 + $0x1b0] sm:$0xff]
        %v663 = vld [vmem:[#allocation7 + $0x1b8] sm:$0xff]
        %v664 = vld [vmem:[#allocation7 + $0x1c0] sm:$0xff]
        %v665 = vld [vmem:[#allocation7 + $0x1c8] sm:$0xff]
        %v666 = vld [vmem:[#allocation7 + $0x1d0] sm:$0xff]
        %v667 = vld [vmem:[#allocation7 + $0x1d8] sm:$0xff]
        %v668 = vld [vmem:[#allocation7 + $0x1e0] sm:$0xff]
        %v669 = vld [vmem:[#allocation7 + $0x1e8] sm:$0xff]
        %v670 = vld [vmem:[#allocation7 + $0x1f0] sm:$0xff]
        %v671 = vld [vmem:[#allocation7 + $0x1f8] sm:$0xff]
        %v672 = vld [vmem:[%s4] sm:$0x3]
        %v674 = vlaneseq
        %v675 = vshrl.u32 %v674, 7
        %v676 = vsub.s32 0, %v675
        %v677 = vrot.slane %v672, %v676
        %v678 = vlaneseq
        %v679 = vshrl.u32 %v678, 7
        %v680 = vsub.s32 1, %v679
        %v681 = vrot.slane %v672, %v680
        %684 = vmatprep.subr.mxu0 %v609
        %685 = vmatpush1.msra.mxu0 %v608
        %686 = vmatprep.subr.mxu0 %v611
        %687 = vmatpush1.msra.mxu0 %v610
        %688 = vmatprep.subr.mxu0 %v613
        %689 = vmatpush1.msra.mxu0 %v612
        %690 = vmatprep.subr.mxu0 %v615
        %691 = vmatpush1.msra.mxu0 %v614
        %692 = vmatprep.subr.mxu0 %v617
        %693 = vmatpush1.msra.mxu0 %v616
        %694 = vmatprep.subr.mxu0 %v619
        %695 = vmatpush1.msra.mxu0 %v618
        %696 = vmatprep.subr.mxu0 %v621
        %697 = vmatpush1.msra.mxu0 %v620
        %698 = vmatprep.subr.mxu0 %v623
        %699 = vmatpush1.msra.mxu0 %v622
        %700 = vmatprep.subr.mxu0 %v625
        %701 = vmatpush1.msra.mxu0 %v624
        %702 = vmatprep.subr.mxu0 %v627
        %703 = vmatpush1.msra.mxu0 %v626
        %704 = vmatprep.subr.mxu0 %v629
        %705 = vmatpush1.msra.mxu0 %v628
        %706 = vmatprep.subr.mxu0 %v631
        %707 = vmatpush1.msra.mxu0 %v630
        %708 = vmatprep.subr.mxu0 %v633
        %709 = vmatpush1.msra.mxu0 %v632
        %710 = vmatprep.subr.mxu0 %v635
        %711 = vmatpush1.msra.mxu0 %v634
        %712 = vmatprep.subr.mxu0 %v637
        %713 = vmatpush1.msra.mxu0 %v636
        %714 = vmatprep.subr.mxu0 %v639
        %715 = vmatpush1.msra.mxu0 %v638
        %716 = vmatprep.subr.mxu0 %v641
        %717 = vmatpush1.msra.mxu0 %v640
        %718 = vmatprep.subr.mxu0 %v643
        %719 = vmatpush1.msra.mxu0 %v642
        %720 = vmatprep.subr.mxu0 %v645
        %721 = vmatpush1.msra.mxu0 %v644
        %722 = vmatprep.subr.mxu0 %v647
        %723 = vmatpush1.msra.mxu0 %v646
        %724 = vmatprep.subr.mxu0 %v649
        %725 = vmatpush1.msra.mxu0 %v648
        %726 = vmatprep.subr.mxu0 %v651
        %727 = vmatpush1.msra.mxu0 %v650
        %728 = vmatprep.subr.mxu0 %v653
        %729 = vmatpush1.msra.mxu0 %v652
        %730 = vmatprep.subr.mxu0 %v655
        %731 = vmatpush1.msra.mxu0 %v654
        %732 = vmatprep.subr.mxu0 %v657
        %733 = vmatpush1.msra.mxu0 %v656
        %734 = vmatprep.subr.mxu0 %v659
        %735 = vmatpush1.msra.mxu0 %v658
        %736 = vmatprep.subr.mxu0 %v661
        %737 = vmatpush1.msra.mxu0 %v660
        %738 = vmatprep.subr.mxu0 %v663
        %739 = vmatpush1.msra.mxu0 %v662
        %740 = vmatprep.subr.mxu0 %v665
        %741 = vmatpush1.msra.mxu0 %v664
        %742 = vmatprep.subr.mxu0 %v667
        %743 = vmatpush1.msra.mxu0 %v666
        %744 = vmatprep.subr.mxu0 %v669
        %745 = vmatpush1.msra.mxu0 %v668
        %746 = vmatprep.subr.mxu0 %v671
        %747 = vmatpush1.msra.mxu0 %v670
        %748 = vmatprep.mubr.f32.mxu0 %v577
        %749 = vmatmul.mubr.f32.gmra.mrb[0].mxu0 %v576
        %v750 = vpop.f32.mrb[0].mxu0
        %v751 = vadd.f32 %v677, %v750
        %v752 = vpop.f32.mrb[0].mxu0
        %v753 = vadd.f32 %v681, %v752
        %754 = vmatprep.mubr.f32.mxu0 %v579
        %755 = vmatmul.mubr.f32.gmra.mrb[0].mxu0 %v578
        %v756 = vpop.f32.mrb[0].mxu0
        %v757 = vadd.f32 %v677, %v756
        %v758 = vpop.f32.mrb[0].mxu0
        %v759 = vadd.f32 %v681, %v758
        %760 = vmatprep.mubr.f32.mxu0 %v581
        %761 = vmatmul.mubr.f32.gmra.mrb[0].mxu0 %v580
        %v762 = vpop.f32.mrb[0].mxu0
        %v763 = vadd.f32 %v677, %v762
        %v764 = vpop.f32.mrb[0].mxu0
        %v765 = vadd.f32 %v681, %v764
        %766 = vmatprep.mubr.f32.mxu0 %v583
        %767 = vmatmul.mubr.f32.gmra.mrb[0].mxu0 %v582
        %v768 = vpop.f32.mrb[0].mxu0
        %v769 = vadd.f32 %v677, %v768
        %v770 = vpop.f32.mrb[0].mxu0
        %v771 = vadd.f32 %v681, %v770
        %772 = vmatprep.mubr.f32.mxu0 %v585
        %773 = vmatmul.mubr.f32.gmra.mrb[0].mxu0 %v584
        %v774 = vpop.f32.mrb[0].mxu0
        %v775 = vadd.f32 %v677, %v774
        %v776 = vpop.f32.mrb[0].mxu0
        %v777 = vadd.f32 %v681, %v776
        %778 = vmatprep.mubr.f32.mxu0 %v587
        %779 = vmatmul.mubr.f32.gmra.mrb[0].mxu0 %v586
        %v780 = vpop.f32.mrb[0].mxu0
        %v781 = vadd.f32 %v677, %v780
        %v782 = vpop.f32.mrb[0].mxu0
        %v783 = vadd.f32 %v681, %v782
        %784 = vmatprep.mubr.f32.mxu0 %v589
        %785 = vmatmul.mubr.f32.gmra.mrb[0].mxu0 %v588
        %v786 = vpop.f32.mrb[0].mxu0
        %v787 = vadd.f32 %v677, %v786
        %v788 = vpop.f32.mrb[0].mxu0
        %v789 = vadd.f32 %v681, %v788
        %790 = vmatprep.mubr.f32.mxu0 %v591
        %791 = vmatmul.mubr.f32.gmra.mrb[0].mxu0 %v590
        %v792 = vpop.f32.mrb[0].mxu0
        %v793 = vadd.f32 %v677, %v792
        %v794 = vpop.f32.mrb[0].mxu0
        %v795 = vadd.f32 %v681, %v794
        %796 = vmatprep.mubr.f32.mxu0 %v593
        %797 = vmatmul.mubr.f32.gmra.mrb[0].mxu0 %v592
        %v798 = vpop.f32.mrb[0].mxu0
        %v799 = vadd.f32 %v677, %v798
        %v800 = vpop.f32.mrb[0].mxu0
        %v801 = vadd.f32 %v681, %v800
        %802 = vmatprep.mubr.f32.mxu0 %v595
        %803 = vmatmul.mubr.f32.gmra.mrb[0].mxu0 %v594
        %v804 = vpop.f32.mrb[0].mxu0
        %v805 = vadd.f32 %v677, %v804
        %v806 = vpop.f32.mrb[0].mxu0
        %v807 = vadd.f32 %v681, %v806
        %808 = vmatprep.mubr.f32.mxu0 %v597
        %809 = vmatmul.mubr.f32.gmra.mrb[0].mxu0 %v596
        %v810 = vpop.f32.mrb[0].mxu0
        %v811 = vadd.f32 %v677, %v810
        %v812 = vpop.f32.mrb[0].mxu0
        %v813 = vadd.f32 %v681, %v812
        %814 = vmatprep.mubr.f32.mxu0 %v599
        %815 = vmatmul.mubr.f32.gmra.mrb[0].mxu0 %v598
        %v816 = vpop.f32.mrb[0].mxu0
        %v817 = vadd.f32 %v677, %v816
        %v818 = vpop.f32.mrb[0].mxu0
        %v819 = vadd.f32 %v681, %v818
        %820 = vmatprep.mubr.f32.mxu0 %v601
        %821 = vmatmul.mubr.f32.gmra.mrb[0].mxu0 %v600
        %v822 = vpop.f32.mrb[0].mxu0
        %v823 = vadd.f32 %v677, %v822
        %v824 = vpop.f32.mrb[0].mxu0
        %v825 = vadd.f32 %v681, %v824
        %826 = vmatprep.mubr.f32.mxu0 %v603
        %827 = vmatmul.mubr.f32.gmra.mrb[0].mxu0 %v602
        %v828 = vpop.f32.mrb[0].mxu0
        %v829 = vadd.f32 %v677, %v828
        %v830 = vpop.f32.mrb[0].mxu0
        %v831 = vadd.f32 %v681, %v830
        %832 = vmatprep.mubr.f32.mxu0 %v605
        %833 = vmatmul.mubr.f32.gmra.mrb[0].mxu0 %v604
        %v834 = vpop.f32.mrb[0].mxu0
        %v835 = vadd.f32 %v677, %v834
        %v836 = vpop.f32.mrb[0].mxu0
        %v837 = vadd.f32 %v681, %v836
        %838 = vmatprep.mubr.f32.mxu0 %v607
        %839 = vmatmul.mubr.f32.gmra.mrb[0].mxu0 %v606
        %v840 = vpop.f32.mrb[0].mxu0
        %v841 = vadd.f32 %v677, %v840
        %v842 = vpop.f32.mrb[0].mxu0
        %v843 = vadd.f32 %v681, %v842
        %844 = vdwg.mxu0
        %v845 = vmax.f32 %v753, -20.0
        %v846 = vmax.f32 %v759, -20.0
        %v847 = vmax.f32 %v765, -20.0
        %v848 = vmax.f32 %v771, -20.0
        %v849 = vmax.f32 %v777, -20.0
        %v850 = vmax.f32 %v783, -20.0
        %v851 = vmax.f32 %v789, -20.0
        %v852 = vmax.f32 %v795, -20.0
        %v853 = vmax.f32 %v801, -20.0
        %v854 = vmax.f32 %v807, -20.0
        %v855 = vmax.f32 %v813, -20.0
        %v856 = vmax.f32 %v819, -20.0
        %v857 = vmax.f32 %v825, -20.0
        %v858 = vmax.f32 %v831, -20.0
        %v859 = vmax.f32 %v837, -20.0
        %v860 = vmax.f32 %v843, -20.0
        %v861 = vmin.f32 %v845, 2.0
        %v862 = vmin.f32 %v846, 2.0
        %v863 = vmin.f32 %v847, 2.0
        %v864 = vmin.f32 %v848, 2.0
        %v865 = vmin.f32 %v849, 2.0
        %v866 = vmin.f32 %v850, 2.0
        %v867 = vmin.f32 %v851, 2.0
        %v868 = vmin.f32 %v852, 2.0
        %v869 = vmin.f32 %v853, 2.0
        %v870 = vmin.f32 %v854, 2.0
        %v871 = vmin.f32 %v855, 2.0
        %v872 = vmin.f32 %v856, 2.0
        %v873 = vmin.f32 %v857, 2.0
        %v874 = vmin.f32 %v858, 2.0
        %v875 = vmin.f32 %v859, 2.0
        %v876 = vmin.f32 %v860, 2.0
        %v877 = vmul.f32 %v861, 1.442695
        %v878 = vpow.pop %v877
        %v879 = vmul.f32 %v862, 1.442695
        %v880 = vpow.pop %v879
        %v881 = vmul.f32 %v863, 1.442695
        %v882 = vpow.pop %v881
        %v883 = vmul.f32 %v864, 1.442695
        %v884 = vpow.pop %v883
        %v885 = vmul.f32 %v865, 1.442695
        %v886 = vpow.pop %v885
        %v887 = vmul.f32 %v866, 1.442695
        %v888 = vpow.pop %v887
        %v889 = vmul.f32 %v867, 1.442695
        %v890 = vpow.pop %v889
        %v891 = vmul.f32 %v868, 1.442695
        %v892 = vpow.pop %v891
        %v893 = vmul.f32 %v869, 1.442695
        %v894 = vpow.pop %v893
        %v895 = vmul.f32 %v870, 1.442695
        %v896 = vpow.pop %v895
        %v897 = vmul.f32 %v871, 1.442695
        %v898 = vpow.pop %v897
        %v899 = vmul.f32 %v872, 1.442695
        %v900 = vpow.pop %v899
        %v901 = vmul.f32 %v873, 1.442695
        %v902 = vpow.pop %v901
        %v903 = vmul.f32 %v874, 1.442695
        %v904 = vpow.pop %v903
        %v905 = vmul.f32 %v875, 1.442695
        %v906 = vpow.pop %v905
        %v907 = vmul.f32 %v876, 1.442695
        %v908 = vpow.pop %v907
        %909 = vst [vmem:[%s272] sm:$0xff] %v751
        %910 = vst [vmem:[%s272 + $0x8] sm:$0xff] %v878
        %911 = vst [vmem:[%s272 + $0x10] sm:$0xff] %v757
        %912 = vst [vmem:[%s272 + $0x18] sm:$0xff] %v880
        %913 = vst [vmem:[%s272 + $0x20] sm:$0xff] %v763
        %914 = vst [vmem:[%s272 + $0x28] sm:$0xff] %v882
        %915 = vst [vmem:[%s272 + $0x30] sm:$0xff] %v769
        %916 = vst [vmem:[%s272 + $0x38] sm:$0xff] %v884
        %917 = vst [vmem:[%s272 + $0x40] sm:$0xff] %v775
        %918 = vst [vmem:[%s272 + $0x48] sm:$0xff] %v886
        %919 = vst [vmem:[%s272 + $0x50] sm:$0xff] %v781
        %920 = vst [vmem:[%s272 + $0x58] sm:$0xff] %v888
        %921 = vst [vmem:[%s272 + $0x60] sm:$0xff] %v787
        %922 = vst [vmem:[%s272 + $0x68] sm:$0xff] %v890
        %923 = vst [vmem:[%s272 + $0x70] sm:$0xff] %v793
        %924 = vst [vmem:[%s272 + $0x78] sm:$0xff] %v892
        %925 = vst [vmem:[%s272 + $0x80] sm:$0xff] %v799
        %926 = vst [vmem:[%s272 + $0x88] sm:$0xff] %v894
        %927 = vst [vmem:[%s272 + $0x90] sm:$0xff] %v805
        %928 = vst [vmem:[%s272 + $0x98] sm:$0xff] %v896
        %929 = vst [vmem:[%s272 + $0xa0] sm:$0xff] %v811
        %930 = vst [vmem:[%s272 + $0xa8] sm:$0xff] %v898
        %931 = vst [vmem:[%s272 + $0xb0] sm:$0xff] %v817
        %932 = vst [vmem:[%s272 + $0xb8] sm:$0xff] %v900
        %933 = vst [vmem:[%s272 + $0xc0] sm:$0xff] %v823
        %934 = vst [vmem:[%s272 + $0xc8] sm:$0xff] %v902
        %935 = vst [vmem:[%s272 + $0xd0] sm:$0xff] %v829
        %936 = vst [vmem:[%s272 + $0xd8] sm:$0xff] %v904
        %937 = vst [vmem:[%s272 + $0xe0] sm:$0xff] %v835
        %938 = vst [vmem:[%s272 + $0xe8] sm:$0xff] %v906
        %939 = vst [vmem:[%s272 + $0xf0] sm:$0xff] %v841
        %940 = vst [vmem:[%s272 + $0xf8] sm:$0xff] %v908
        %s941 = sand.u32 %s141, 1
        %s942 = scalar_lea.sflag [#allocation4], %s941
        %s943 = sand.u32 %s141, 1
        %s944 = smul.addr %s943, 256
        %s945 = scalar_lea.vmem [#allocation8], %s944
        // Predicated region
        $region53: #{tpu_custom_call.1} parent=39 // pred_check
          %p946 = pneg %p151
        $region54: #{tpu_custom_call.1} parent=39 // pred_check_branch
          %948 = sbr.rel (%p946) target = $region56
        $region55: #{tpu_custom_call.1} parent=39 // pred_region
          %s949 = smul.u32 16, %s23
          %s951 = ssub.s32 4096, 4096
          %952 = vsyncadd %s942, %s951
          %s953 = smul.addr %s949, 2
          %s954 = smul.addr %s953, 128
          %s955 = scalar_lea.hbm %s5, %s954
          %s956 = sshll.u32 %s945, 4
          %s957 = int_to_ptr.vmem [resolvable:$true] %s956
          %962 = dma.vmem_to_hbm [thread:$0]  %s957, 4096, %s955, %s942, 256, 256, 16
        $region56: #{tpu_custom_call.1} parent=39 // pred_fallthru
          _
      $region40: #{tpu_custom_call.1} parent=5 // pred_fallthru
        _
      %p963 = scmp.le.s32.totalorder 2, %s18
      // Predicated region
      $region57: #{tpu_custom_call.1} parent=5 // pred_check
        %p964 = pneg %p963
      $region58: #{tpu_custom_call.1} parent=5 // pred_check_branch
        %966 = sbr.rel (%p964) target = $region60
      $region59: #{tpu_custom_call.1} parent=5 // pred_region
        %s967 = ssub.s32 %s18, 2
        // Predicated region
        $region61: #{tpu_custom_call.1} parent=59 // pred_check
          %p968 = pneg %p157
        $region62: #{tpu_custom_call.1} parent=59 // pred_check_branch
          %970 = sbr.rel (%p968) target = $region64
        $region63: #{tpu_custom_call.1} parent=59 // pred_region
          %s971 = sand.u32 %s142, 1
          %s972 = scalar_lea.sflag [#allocation4], %s971
          %s973 = sand.u32 %s142, 1
          %s974 = smul.addr %s973, 256
          %s975 = scalar_lea.vmem [#allocation8], %s974
          %976 = dma.done %s972, 4096
        $region64: #{tpu_custom_call.1} parent=59 // pred_fallthru
          _
      $region60: #{tpu_custom_call.1} parent=5 // pred_fallthru
        _
    $region6: #{tpu_custom_call.1} parent=1 // loop_footer
      %s22 = sadd.s32 1, %s18
    $region7: #{tpu_custom_call.1} parent=1 // loop_footer_branch
      %17 = sbr.rel target = $region3
    $region8: #{tpu_custom_call.1} parent=1 // loop_exit
      _
    %977 = vsyncpa [#allocation3], 1
    %s978 = scalar_lea.sflag [#allocation3], 1
    %979 = vsyncpa %s978, 1
    %980 = vsyncpa [#allocation6], 1
    %981 = vsyncpa [#allocation4], 1
    %s982 = scalar_lea.sflag [#allocation4], 1
    %983 = vsyncpa %s982, 1

// kernel: tpu_custom_call.1
$region0: #{tpu_custom_call.1}
  #allocation0 [shape = 'u32[]', space=smem, size = 0x4, offset = 0x4, fixed_abs, tag = 'smem constant byte address 0x4 - core index']
  #allocation1 [shape = 'u32[144,128]{1,0:T(1,128)}', space=vmem, size = 0x12000, scoped, tag = 'internal scratch']
  %s0 = inlined_call_operand.hbm [shape: f32[256,256], index: 0, kind: input, shape index: {}]
  %s1 = inlined_call_operand.hbm [shape: f32[256,256], index: 1, kind: input, shape index: {}]
  %s2 = inlined_call_operand.vmem [shape: f32[1,256], index: 2, kind: input, shape index: {}]
  %s3 = inlined_call_operand.hbm [shape: f32[256,256], index: 3, kind: input, shape index: {}]
  %s4 = inlined_call_operand.vmem [shape: f32[1,256], index: 4, kind: input, shape index: {}]
  %s5 = inlined_call_operand.hbm [shape: f32[256,256], index: 5, kind: output, shape index: {}]
  %s6 = sld [smem:[#allocation0]]
  $region65: #{tpu_custom_call.1} parent=0
    _
  %s8 = ssub.s32 1, %s6
  %s9 = scalar_select 0, %s8, %s6
  $region1: #{tpu_custom_call.1} parent=0
    #allocation2 [shape = 'u8[262144]{0}', space=vmem, size = 0x40000, scoped, tag = 'input window, operand 0']
    #allocation3 [shape = 's32[2]{0}', space=sflag, size = 0x8, scoped, tag = 'scoped memory for tpu_custom_call.1']
    #allocation4 [shape = 's32[2]{0}', space=sflag, size = 0x8, scoped, tag = 'scoped memory for tpu_custom_call.1']
    #allocation5 [shape = 'u8[262144]{0}', space=vmem, size = 0x40000, scoped, tag = 'input window, operand 1, single buffered']
    #allocation6 [shape = 's32[1]{0}', space=sflag, size = 0x4, scoped, tag = 'scoped memory for tpu_custom_call.1']
    #allocation7 [shape = 'u8[262144]{0}', space=vmem, size = 0x40000, scoped, tag = 'input window, operand 3, single buffered']
    #allocation8 [shape = 'u8[262144]{0}', space=vmem, size = 0x40000, scoped, tag = 'output window, operand 0']
    %10 = vsyncpa [#allocation3], 0
    %s11 = scalar_lea.sflag [#allocation3], 1
    %12 = vsyncpa %s11, 0
    %13 = vsyncpa [#allocation6], 0
    %14 = vsyncpa [#allocation4], 0
    %s15 = scalar_lea.sflag [#allocation4], 1
    %16 = vsyncpa %s15, 0
    loop: start=0, step=1, limit=4
    $region2: #{tpu_custom_call.1} parent=1 // loop_pre_header
      _
    $region3: #{tpu_custom_call.1} parent=1 // loop_header
      %s18 = sphi 0, %s22
      %p19 = scmp.ge.s32.totalorder %s18, 4
      %s28 = sphi 0, %s30
      %s31 = sphi 0, %s28
      %s32 = sphi 0, %s31
      %s48 = sphi 0, %s32
      %s52 = sphi 0, %s52
      %s54 = sphi 0, %s52
      %s55 = sphi 0, %s54
      %s69 = sphi 0, %s55
      %s73 = sphi 0, %s73
      %s75 = sphi 0, %s73
      %s76 = sphi 0, %s75
      %s90 = sphi 0, %s76
      %s94 = sphi 0, %s94
      %s96 = sphi 0, %s94
      %s97 = sphi 0, %s96
      %s111 = sphi 0, %s97
      %s115 = sphi 0, %s115
      %s117 = sphi 0, %s115
      %s118 = sphi 0, %s117
      %s132 = sphi 0, %s118
      %s138 = sphi 0, %s140
      %s141 = sphi 0, %s138
      %s142 = sphi 0, %s141
      %s158 = sphi 0, %s142
    $region4: #{tpu_custom_call.1} parent=1 // loop_header_branch
      %21 = sbr.rel (%p19) target = $region8
    $region5: #{tpu_custom_call.1} parent=1 // loop_body
      %s23 = ssub.s32 %s18, 1
      %s24 = ssub.s32 %s18, 2
      %s25 = sadd.s32 %s18, 1
      %s26 = ssub.s32 %s18, %s25
      %p27 = scmp.eq.s32.totalorder %s26, 0
      %s29 = sadd.s32 %s28, 1
      %s30 = scalar_select %p27, %s28, %s29
      %p33 = pneg %p27
      %p34 = scmp.eq.s32.totalorder %s18, 1
      %p35 = por %p33, %p34
      %p36 = scmp.ne.s32.totalorder %s28, %s31
      %p37 = scmp.eq.s32.totalorder %s18, 0
      %p38 = por %p36, %p37
      %p39 = scmp.ne.s32.totalorder %s28, %s31
      %p40 = scmp.eq.s32.totalorder %s23, 1
      %p41 = por %p39, %p40
      %p42 = scmp.ne.s32.totalorder %s31, %s32
      %p43 = scmp.eq.s32.totalorder %s23, 0
      %p44 = por %p42, %p43
      %p45 = scmp.ne.s32.totalorder %s31, %s32
      %p46 = scmp.eq.s32.totalorder %s24, 1
      %p47 = por %p45, %p46
      %p49 = scmp.ne.s32.totalorder %s32, %s48
      %p50 = scmp.eq.s32.totalorder %s24, 0
      %p51 = por %p49, %p50
      %s53 = sadd.s32 %s52, 1
      %p56 = scmp.eq.s32.totalorder %s18, 1
      %p57 = scmp.ne.s32.totalorder %s52, %s54
      %p58 = scmp.eq.s32.totalorder %s18, 0
      %p59 = por %p57, %p58
      %p60 = scmp.ne.s32.totalorder %s52, %s54
      %p61 = scmp.eq.s32.totalorder %s23, 1
      %p62 = por %p60, %p61
      %p63 = scmp.ne.s32.totalorder %s54, %s55
      %p64 = scmp.eq.s32.totalorder %s23, 0
      %p65 = por %p63, %p64
      %p66 = scmp.ne.s32.totalorder %s54, %s55
      %p67 = scmp.eq.s32.totalorder %s24, 1
      %p68 = por %p66, %p67
      %p70 = scmp.ne.s32.totalorder %s55, %s69
      %p71 = scmp.eq.s32.totalorder %s24, 0
      %p72 = por %p70, %p71
      %s74 = sadd.s32 %s73, 1
      %p77 = scmp.eq.s32.totalorder %s18, 1
      %p78 = scmp.ne.s32.totalorder %s73, %s75
      %p79 = scmp.eq.s32.totalorder %s18, 0
      %p80 = por %p78, %p79
      %p81 = scmp.ne.s32.totalorder %s73, %s75
      %p82 = scmp.eq.s32.totalorder %s23, 1
      %p83 = por %p81, %p82
      %p84 = scmp.ne.s32.totalorder %s75, %s76
      %p85 = scmp.eq.s32.totalorder %s23, 0
      %p86 = por %p84, %p85
      %p87 = scmp.ne.s32.totalorder %s75, %s76
      %p88 = scmp.eq.s32.totalorder %s24, 1
      %p89 = por %p87, %p88
      %p91 = scmp.ne.s32.totalorder %s76, %s90
      %p92 = scmp.eq.s32.totalorder %s24, 0
      %p93 = por %p91, %p92
      %s95 = sadd.s32 %s94, 1
      %p98 = scmp.eq.s32.totalorder %s18, 1
      %p99 = scmp.ne.s32.totalorder %s94, %s96
      %p100 = scmp.eq.s32.totalorder %s18, 0
      %p101 = por %p99, %p100
      %p102 = scmp.ne.s32.totalorder %s94, %s96
      %p103 = scmp.eq.s32.totalorder %s23, 1
      %p104 = por %p102, %p103
      %p105 = scmp.ne.s32.totalorder %s96, %s97
      %p106 = scmp.eq.s32.totalorder %s23, 0
      %p107 = por %p105, %p106
      %p108 = scmp.ne.s32.totalorder %s96, %s97
      %p109 = scmp.eq.s32.totalorder %s24, 1
      %p110 = por %p108, %p109
      %p112 = scmp.ne.s32.totalorder %s97, %s111
      %p113 = scmp.eq.s32.totalorder %s24, 0
      %p114 = por %p112, %p113
      %s116 = sadd.s32 %s115, 1
      %p119 = scmp.eq.s32.totalorder %s18, 1
      %p120 = scmp.ne.s32.totalorder %s115, %s117
      %p121 = scmp.eq.s32.totalorder %s18, 0
      %p122 = por %p120, %p121
      %p123 = scmp.ne.s32.totalorder %s115, %s117
      %p124 = scmp.eq.s32.totalorder %s23, 1
      %p125 = por %p123, %p124
      %p126 = scmp.ne.s32.totalorder %s117, %s118
      %p127 = scmp.eq.s32.totalorder %s23, 0
      %p128 = por %p126, %p127
      %p129 = scmp.ne.s32.totalorder %s117, %s118
      %p130 = scmp.eq.s32.totalorder %s24, 1
      %p131 = por %p129, %p130
      %p133 = scmp.ne.s32.totalorder %s118, %s132
      %p134 = scmp.eq.s32.totalorder %s24, 0
      %p135 = por %p133, %p134
      %s136 = ssub.s32 %s18, %s25
      %p137 = scmp.eq.s32.totalorder %s136, 0
      %s139 = sadd.s32 %s138, 1
      %s140 = scalar_select %p137, %s138, %s139
      %p143 = pneg %p137
      %p144 = scmp.eq.s32.totalorder %s18, 1
      %p145 = por %p143, %p144
      %p146 = scmp.ne.s32.totalorder %s138, %s141
      %p147 = scmp.eq.s32.totalorder %s18, 0
      %p148 = por %p146, %p147
      %p149 = scmp.ne.s32.totalorder %s138, %s141
      %p150 = scmp.eq.s32.totalorder %s23, 1
      %p151 = por %p149, %p150
      %p152 = scmp.ne.s32.totalorder %s141, %s142
      %p153 = scmp.eq.s32.totalorder %s23, 0
      %p154 = por %p152, %p153
      %p155 = scmp.ne.s32.totalorder %s141, %s142
      %p156 = scmp.eq.s32.totalorder %s24, 1
      %p157 = por %p155, %p156
      %p159 = scmp.ne.s32.totalorder %s142, %s158
      %p160 = scmp.eq.s32.totalorder %s24, 0
      %p161 = por %p159, %p160
      %p162 = scmp.le.s32.totalorder 1, %s18
      %p163 = scmp.lt.s32.totalorder %s18, 3
      %p164 = pnand %p162, %p163
      %p165 = pneg %p164
      // Predicated region
      $region9: #{tpu_custom_call.1} parent=5 // pred_check
        _
      $region10: #{tpu_custom_call.1} parent=5 // pred_check_branch
        %167 = sbr.rel (%p164) target = $region12
      $region11: #{tpu_custom_call.1} parent=5 // pred_region
        %s168 = ssub.s32 %s18, 1
        // Predicated region
        $region13: #{tpu_custom_call.1} parent=11 // pred_check
          %p169 = pneg %p65
        $region14: #{tpu_custom_call.1} parent=11 // pred_check_branch
          %171 = sbr.rel (%p169) target = $region16
        $region15: #{tpu_custom_call.1} parent=11 // pred_region
          %s173 = ssub.s32 8192, 8192
          %174 = vsyncadd [#allocation6], %s173
          %s175 = sshll.u32 [#allocation5], 4
          %s176 = int_to_ptr.vmem [resolvable:$true] %s175
          %181 = dma.hbm_to_vmem [thread:$0]  %s1, 8192, %s176, [#allocation6], 256, 256, 16
        $region16: #{tpu_custom_call.1} parent=11 // pred_fallthru
          _
        // Predicated region
        $region17: #{tpu_custom_call.1} parent=11 // pred_check
          %p182 = pneg %p86
        $region18: #{tpu_custom_call.1} parent=11 // pred_check_branch
          %184 = sbr.rel (%p182) target = $region20
        $region19: #{tpu_custom_call.1} parent=11 // pred_region
          _
        $region20: #{tpu_custom_call.1} parent=11 // pred_fallthru
          _
        // Predicated region
        $region21: #{tpu_custom_call.1} parent=11 // pred_check
          %p185 = pneg %p107
        $region22: #{tpu_custom_call.1} parent=11 // pred_check_branch
          %187 = sbr.rel (%p185) target = $region24
        $region23: #{tpu_custom_call.1} parent=11 // pred_region
          %s189 = ssub.s32 8192, 8192
          %190 = vsyncadd [#allocation6], %s189
          %s191 = sshll.u32 [#allocation7], 4
          %s192 = int_to_ptr.vmem [resolvable:$true] %s191
          %197 = dma.hbm_to_vmem [thread:$0]  %s3, 8192, %s192, [#allocation6], 256, 256, 16
        $region24: #{tpu_custom_call.1} parent=11 // pred_fallthru
          _
        // Predicated region
        $region25: #{tpu_custom_call.1} parent=11 // pred_check
          %p198 = pneg %p128
        $region26: #{tpu_custom_call.1} parent=11 // pred_check_branch
          %200 = sbr.rel (%p198) target = $region28
        $region27: #{tpu_custom_call.1} parent=11 // pred_region
          _
        $region28: #{tpu_custom_call.1} parent=11 // pred_fallthru
          _
      $region12: #{tpu_custom_call.1} parent=5 // pred_fallthru
        _
      %p201 = scmp.lt.s32.totalorder %s18, 2
      // Predicated region
      $region29: #{tpu_custom_call.1} parent=5 // pred_check
        %p202 = pneg %p201
      $region30: #{tpu_custom_call.1} parent=5 // pred_check_branch
        %204 = sbr.rel (%p202) target = $region32
      $region31: #{tpu_custom_call.1} parent=5 // pred_region
        // Predicated region
        $region33: #{tpu_custom_call.1} parent=31 // pred_check
          %p205 = pneg %p38
        $region34: #{tpu_custom_call.1} parent=31 // pred_check_branch
          %207 = sbr.rel (%p205) target = $region36
        $region35: #{tpu_custom_call.1} parent=31 // pred_region
          %s208 = sand.u32 %s28, 1
          %s209 = scalar_lea.sflag [#allocation3], %s208
          %s210 = sand.u32 %s28, 1
          %s211 = smul.addr %s210, 256
          %s212 = scalar_lea.vmem [#allocation2], %s211
          %s213 = smul.u32 16, %s18
          %s215 = ssub.s32 4096, 4096
          %216 = vsyncadd %s209, %s215
          %s217 = smul.addr %s213, 2
          %s218 = smul.addr %s217, 128
          %s219 = scalar_lea.hbm %s0, %s218
          %s220 = sshll.u32 %s212, 4
          %s221 = int_to_ptr.vmem [resolvable:$true] %s220
          %226 = dma.hbm_to_vmem [thread:$0]  %s219, 4096, %s221, %s209, 256, 256, 16
        $region36: #{tpu_custom_call.1} parent=31 // pred_fallthru
          _
      $region32: #{tpu_custom_call.1} parent=5 // pred_fallthru
        _
      %p227 = scmp.le.s32.totalorder 1, %s18
      %p228 = scmp.lt.s32.totalorder %s18, 3
      %p229 = pnand %p227, %p228
      %p230 = pneg %p229
      // Predicated region
      $region37: #{tpu_custom_call.1} parent=5 // pred_check
        _
      $region38: #{tpu_custom_call.1} parent=5 // pred_check_branch
        %232 = sbr.rel (%p229) target = $region40
      $region39: #{tpu_custom_call.1} parent=5 // pred_region
        %s233 = ssub.s32 %s18, 1
        %s234 = sand.u32 %s31, 1
        %s235 = scalar_lea.sflag [#allocation3], %s234
        %s236 = sand.u32 %s31, 1
        %s237 = smul.addr %s236, 256
        %s238 = scalar_lea.vmem [#allocation2], %s237
        // Predicated region
        $region41: #{tpu_custom_call.1} parent=39 // pred_check
          %p239 = pneg %p44
        $region42: #{tpu_custom_call.1} parent=39 // pred_check_branch
          %241 = sbr.rel (%p239) target = $region44
        $region43: #{tpu_custom_call.1} parent=39 // pred_region
          %242 = dma.done %s235, 4096
        $region44: #{tpu_custom_call.1} parent=39 // pred_fallthru
          _
        // Predicated region
        $region45: #{tpu_custom_call.1} parent=39 // pred_check
          %p243 = pneg %p65
        $region46: #{tpu_custom_call.1} parent=39 // pred_check_branch
          %245 = sbr.rel (%p243) target = $region48
        $region47: #{tpu_custom_call.1} parent=39 // pred_region
          %246 = dma.done [#allocation6], 8192
        $region48: #{tpu_custom_call.1} parent=39 // pred_fallthru
          _
        // Predicated region
        $region49: #{tpu_custom_call.1} parent=39 // pred_check
          %p247 = pneg %p107
        $region50: #{tpu_custom_call.1} parent=39 // pred_check_branch
          %249 = sbr.rel (%p247) target = $region52
        $region51: #{tpu_custom_call.1} parent=39 // pred_region
          %250 = dma.done [#allocation6], 8192
        $region52: #{tpu_custom_call.1} parent=39 // pred_fallthru
          _
        %s251 = sand.u32 %s31, 1
        %s252 = scalar_lea.sflag [#allocation3], %s251
        %s253 = sand.u32 %s31, 1
        %s254 = smul.addr %s253, 256
        %s255 = scalar_lea.vmem [#allocation2], %s254
        %p256 = pneg %p44
        %p257 = pneg %p41
        %p258 = pneg %p65
        %p259 = pneg %p62
        %p260 = pneg %p86
        %p261 = pneg %p83
        %p262 = pneg %p107
        %p263 = pneg %p104
        %p264 = pneg %p128
        %p265 = pneg %p125
        %p266 = pneg %p154
        %p267 = pneg %p151
        %s268 = sand.u32 %s141, 1
        %s269 = scalar_lea.sflag [#allocation4], %s268
        %s270 = sand.u32 %s141, 1
        %s271 = smul.addr %s270, 256
        %s272 = scalar_lea.vmem [#allocation8], %s271
        %s273 = smul.u32 16, %s23
        %s274 = smul.u32 16, %s23
        %v275 = vld [vmem:[%s238] sm:$0xff]
        %v276 = vld [vmem:[%s238 + $0x8] sm:$0xff]
        %v277 = vld [vmem:[%s238 + $0x10] sm:$0xff]
        %v278 = vld [vmem:[%s238 + $0x18] sm:$0xff]
        %v279 = vld [vmem:[%s238 + $0x20] sm:$0xff]
        %v280 = vld [vmem:[%s238 + $0x28] sm:$0xff]
        %v281 = vld [vmem:[%s238 + $0x30] sm:$0xff]
        %v282 = vld [vmem:[%s238 + $0x38] sm:$0xff]
        %v283 = vld [vmem:[%s238 + $0x40] sm:$0xff]
        %v284 = vld [vmem:[%s238 + $0x48] sm:$0xff]
        %v285 = vld [vmem:[%s238 + $0x50] sm:$0xff]
        %v286 = vld [vmem:[%s238 + $0x58] sm:$0xff]
        %v287 = vld [vmem:[%s238 + $0x60] sm:$0xff]
        %v288 = vld [vmem:[%s238 + $0x68] sm:$0xff]
        %v289 = vld [vmem:[%s238 + $0x70] sm:$0xff]
        %v290 = vld [vmem:[%s238 + $0x78] sm:$0xff]
        %v291 = vld [vmem:[%s238 + $0x80] sm:$0xff]
        %v292 = vld [vmem:[%s238 + $0x88] sm:$0xff]
        %v293 = vld [vmem:[%s238 + $0x90] sm:$0xff]
        %v294 = vld [vmem:[%s238 + $0x98] sm:$0xff]
        %v295 = vld [vmem:[%s238 + $0xa0] sm:$0xff]
        %v296 = vld [vmem:[%s238 + $0xa8] sm:$0xff]
        %v297 = vld [vmem:[%s238 + $0xb0] sm:$0xff]
        %v298 = vld [vmem:[%s238 + $0xb8] sm:$0xff]
        %v299 = vld [vmem:[%s238 + $0xc0] sm:$0xff]
        %v300 = vld [vmem:[%s238 + $0xc8] sm:$0xff]
        %v301 = vld [vmem:[%s238 + $0xd0] sm:$0xff]
        %v302 = vld [vmem:[%s238 + $0xd8] sm:$0xff]
        %v303 = vld [vmem:[%s238 + $0xe0] sm:$0xff]
        %v304 = vld [vmem:[%s238 + $0xe8] sm:$0xff]
        %v305 = vld [vmem:[%s238 + $0xf0] sm:$0xff]
        %v306 = vld [vmem:[%s238 + $0xf8] sm:$0xff]
        %v307 = vld [vmem:[#allocation5] sm:$0xff]
        %v308 = vld [vmem:[#allocation5 + $0x8] sm:$0xff]
        %v309 = vld [vmem:[#allocation5 + $0x10] sm:$0xff]
        %v310 = vld [vmem:[#allocation5 + $0x18] sm:$0xff]
        %v311 = vld [vmem:[#allocation5 + $0x20] sm:$0xff]
        %v312 = vld [vmem:[#allocation5 + $0x28] sm:$0xff]
        %v313 = vld [vmem:[#allocation5 + $0x30] sm:$0xff]
        %v314 = vld [vmem:[#allocation5 + $0x38] sm:$0xff]
        %v315 = vld [vmem:[#allocation5 + $0x40] sm:$0xff]
        %v316 = vld [vmem:[#allocation5 + $0x48] sm:$0xff]
        %v317 = vld [vmem:[#allocation5 + $0x50] sm:$0xff]
        %v318 = vld [vmem:[#allocation5 + $0x58] sm:$0xff]
        %v319 = vld [vmem:[#allocation5 + $0x60] sm:$0xff]
        %v320 = vld [vmem:[#allocation5 + $0x68] sm:$0xff]
        %v321 = vld [vmem:[#allocation5 + $0x70] sm:$0xff]
        %v322 = vld [vmem:[#allocation5 + $0x78] sm:$0xff]
        %v323 = vld [vmem:[#allocation5 + $0x80] sm:$0xff]
        %v324 = vld [vmem:[#allocation5 + $0x88] sm:$0xff]
        %v325 = vld [vmem:[#allocation5 + $0x90] sm:$0xff]
        %v326 = vld [vmem:[#allocation5 + $0x98] sm:$0xff]
        %v327 = vld [vmem:[#allocation5 + $0xa0] sm:$0xff]
        %v328 = vld [vmem:[#allocation5 + $0xa8] sm:$0xff]
        %v329 = vld [vmem:[#allocation5 + $0xb0] sm:$0xff]
        %v330 = vld [vmem:[#allocation5 + $0xb8] sm:$0xff]
        %v331 = vld [vmem:[#allocation5 + $0xc0] sm:$0xff]
        %v332 = vld [vmem:[#allocation5 + $0xc8] sm:$0xff]
        %v333 = vld [vmem:[#allocation5 + $0xd0] sm:$0xff]
        %v334 = vld [vmem:[#allocation5 + $0xd8] sm:$0xff]
        %v335 = vld [vmem:[#allocation5 + $0xe0] sm:$0xff]
        %v336 = vld [vmem:[#allocation5 + $0xe8] sm:$0xff]
        %v337 = vld [vmem:[#allocation5 + $0xf0] sm:$0xff]
        %v338 = vld [vmem:[#allocation5 + $0xf8] sm:$0xff]
        %v339 = vld [vmem:[#allocation5 + $0x100] sm:$0xff]
        %v340 = vld [vmem:[#allocation5 + $0x108] sm:$0xff]
        %v341 = vld [vmem:[#allocation5 + $0x110] sm:$0xff]
        %v342 = vld [vmem:[#allocation5 + $0x118] sm:$0xff]
        %v343 = vld [vmem:[#allocation5 + $0x120] sm:$0xff]
        %v344 = vld [vmem:[#allocation5 + $0x128] sm:$0xff]
        %v345 = vld [vmem:[#allocation5 + $0x130] sm:$0xff]
        %v346 = vld [vmem:[#allocation5 + $0x138] sm:$0xff]
        %v347 = vld [vmem:[#allocation5 + $0x140] sm:$0xff]
        %v348 = vld [vmem:[#allocation5 + $0x148] sm:$0xff]
        %v349 = vld [vmem:[#allocation5 + $0x150] sm:$0xff]
        %v350 = vld [vmem:[#allocation5 + $0x158] sm:$0xff]
        %v351 = vld [vmem:[#allocation5 + $0x160] sm:$0xff]
        %v352 = vld [vmem:[#allocation5 + $0x168] sm:$0xff]
        %v353 = vld [vmem:[#allocation5 + $0x170] sm:$0xff]
        %v354 = vld [vmem:[#allocation5 + $0x178] sm:$0xff]
        %v355 = vld [vmem:[#allocation5 + $0x180] sm:$0xff]
        %v356 = vld [vmem:[#allocation5 + $0x188] sm:$0xff]
        %v357 = vld [vmem:[#allocation5 + $0x190] sm:$0xff]
        %v358 = vld [vmem:[#allocation5 + $0x198] sm:$0xff]
        %v359 = vld [vmem:[#allocation5 + $0x1a0] sm:$0xff]
        %v360 = vld [vmem:[#allocation5 + $0x1a8] sm:$0xff]
        %v361 = vld [vmem:[#allocation5 + $0x1b0] sm:$0xff]
        %v362 = vld [vmem:[#allocation5 + $0x1b8] sm:$0xff]
        %v363 = vld [vmem:[#allocation5 + $0x1c0] sm:$0xff]
        %v364 = vld [vmem:[#allocation5 + $0x1c8] sm:$0xff]
        %v365 = vld [vmem:[#allocation5 + $0x1d0] sm:$0xff]
        %v366 = vld [vmem:[#allocation5 + $0x1d8] sm:$0xff]
        %v367 = vld [vmem:[#allocation5 + $0x1e0] sm:$0xff]
        %v368 = vld [vmem:[#allocation5 + $0x1e8] sm:$0xff]
        %v369 = vld [vmem:[#allocation5 + $0x1f0] sm:$0xff]
        %v370 = vld [vmem:[#allocation5 + $0x1f8] sm:$0xff]
        %v371 = vld [vmem:[%s2] sm:$0x3]
        %v373 = vlaneseq
        %v374 = vshrl.u32 %v373, 7
        %v375 = vsub.s32 0, %v374
        %v376 = vrot.slane %v371, %v375
        %v377 = vlaneseq
        %v378 = vshrl.u32 %v377, 7
        %v379 = vsub.s32 1, %v378
        %v380 = vrot.slane %v371, %v379
        %383 = vmatprep.subr.mxu0 %v308
        %384 = vmatpush1.msra.mxu0 %v307
        %385 = vmatprep.subr.mxu0 %v310
        %386 = vmatpush1.msra.mxu0 %v309
        %387 = vmatprep.subr.mxu0 %v312
        %388 = vmatpush1.msra.mxu0 %v311
        %389 = vmatprep.subr.mxu0 %v314
        %390 = vmatpush1.msra.mxu0 %v313
        %391 = vmatprep.subr.mxu0 %v316
        %392 = vmatpush1.msra.mxu0 %v315
        %393 = vmatprep.subr.mxu0 %v318
        %394 = vmatpush1.msra.mxu0 %v317
        %395 = vmatprep.subr.mxu0 %v320
        %396 = vmatpush1.msra.mxu0 %v319
        %397 = vmatprep.subr.mxu0 %v322
        %398 = vmatpush1.msra.mxu0 %v321
        %399 = vmatprep.subr.mxu0 %v324
        %400 = vmatpush1.msra.mxu0 %v323
        %401 = vmatprep.subr.mxu0 %v326
        %402 = vmatpush1.msra.mxu0 %v325
        %403 = vmatprep.subr.mxu0 %v328
        %404 = vmatpush1.msra.mxu0 %v327
        %405 = vmatprep.subr.mxu0 %v330
        %406 = vmatpush1.msra.mxu0 %v329
        %407 = vmatprep.subr.mxu0 %v332
        %408 = vmatpush1.msra.mxu0 %v331
        %409 = vmatprep.subr.mxu0 %v334
        %410 = vmatpush1.msra.mxu0 %v333
        %411 = vmatprep.subr.mxu0 %v336
        %412 = vmatpush1.msra.mxu0 %v335
        %413 = vmatprep.subr.mxu0 %v338
        %414 = vmatpush1.msra.mxu0 %v337
        %415 = vmatprep.subr.mxu0 %v340
        %416 = vmatpush1.msra.mxu0 %v339
        %417 = vmatprep.subr.mxu0 %v342
        %418 = vmatpush1.msra.mxu0 %v341
        %419 = vmatprep.subr.mxu0 %v344
        %420 = vmatpush1.msra.mxu0 %v343
        %421 = vmatprep.subr.mxu0 %v346
        %422 = vmatpush1.msra.mxu0 %v345
        %423 = vmatprep.subr.mxu0 %v348
        %424 = vmatpush1.msra.mxu0 %v347
        %425 = vmatprep.subr.mxu0 %v350
        %426 = vmatpush1.msra.mxu0 %v349
        %427 = vmatprep.subr.mxu0 %v352
        %428 = vmatpush1.msra.mxu0 %v351
        %429 = vmatprep.subr.mxu0 %v354
        %430 = vmatpush1.msra.mxu0 %v353
        %431 = vmatprep.subr.mxu0 %v356
        %432 = vmatpush1.msra.mxu0 %v355
        %433 = vmatprep.subr.mxu0 %v358
        %434 = vmatpush1.msra.mxu0 %v357
        %435 = vmatprep.subr.mxu0 %v360
        %436 = vmatpush1.msra.mxu0 %v359
        %437 = vmatprep.subr.mxu0 %v362
        %438 = vmatpush1.msra.mxu0 %v361
        %439 = vmatprep.subr.mxu0 %v364
        %440 = vmatpush1.msra.mxu0 %v363
        %441 = vmatprep.subr.mxu0 %v366
        %442 = vmatpush1.msra.mxu0 %v365
        %443 = vmatprep.subr.mxu0 %v368
        %444 = vmatpush1.msra.mxu0 %v367
        %445 = vmatprep.subr.mxu0 %v370
        %446 = vmatpush1.msra.mxu0 %v369
        %447 = vmatprep.mubr.f32.mxu0 %v276
        %448 = vmatmul.mubr.f32.gmra.mrb[0].mxu0 %v275
        %v449 = vpop.f32.mrb[0].mxu0
        %v450 = vadd.f32 %v376, %v449
        %v451 = vpop.f32.mrb[0].mxu0
        %v452 = vadd.f32 %v380, %v451
        %453 = vmatprep.mubr.f32.mxu0 %v278
        %454 = vmatmul.mubr.f32.gmra.mrb[0].mxu0 %v277
        %v455 = vpop.f32.mrb[0].mxu0
        %v456 = vadd.f32 %v376, %v455
        %v457 = vpop.f32.mrb[0].mxu0
        %v458 = vadd.f32 %v380, %v457
        %459 = vmatprep.mubr.f32.mxu0 %v280
        %460 = vmatmul.mubr.f32.gmra.mrb[0].mxu0 %v279
        %v461 = vpop.f32.mrb[0].mxu0
        %v462 = vadd.f32 %v376, %v461
        %v463 = vpop.f32.mrb[0].mxu0
        %v464 = vadd.f32 %v380, %v463
        %465 = vmatprep.mubr.f32.mxu0 %v282
        %466 = vmatmul.mubr.f32.gmra.mrb[0].mxu0 %v281
        %v467 = vpop.f32.mrb[0].mxu0
        %v468 = vadd.f32 %v376, %v467
        %v469 = vpop.f32.mrb[0].mxu0
        %v470 = vadd.f32 %v380, %v469
        %471 = vmatprep.mubr.f32.mxu0 %v284
        %472 = vmatmul.mubr.f32.gmra.mrb[0].mxu0 %v283
        %v473 = vpop.f32.mrb[0].mxu0
        %v474 = vadd.f32 %v376, %v473
        %v475 = vpop.f32.mrb[0].mxu0
        %v476 = vadd.f32 %v380, %v475
        %477 = vmatprep.mubr.f32.mxu0 %v286
        %478 = vmatmul.mubr.f32.gmra.mrb[0].mxu0 %v285
        %v479 = vpop.f32.mrb[0].mxu0
        %v480 = vadd.f32 %v376, %v479
        %v481 = vpop.f32.mrb[0].mxu0
        %v482 = vadd.f32 %v380, %v481
        %483 = vmatprep.mubr.f32.mxu0 %v288
        %484 = vmatmul.mubr.f32.gmra.mrb[0].mxu0 %v287
        %v485 = vpop.f32.mrb[0].mxu0
        %v486 = vadd.f32 %v376, %v485
        %v487 = vpop.f32.mrb[0].mxu0
        %v488 = vadd.f32 %v380, %v487
        %489 = vmatprep.mubr.f32.mxu0 %v290
        %490 = vmatmul.mubr.f32.gmra.mrb[0].mxu0 %v289
        %v491 = vpop.f32.mrb[0].mxu0
        %v492 = vadd.f32 %v376, %v491
        %v493 = vpop.f32.mrb[0].mxu0
        %v494 = vadd.f32 %v380, %v493
        %495 = vmatprep.mubr.f32.mxu0 %v292
        %496 = vmatmul.mubr.f32.gmra.mrb[0].mxu0 %v291
        %v497 = vpop.f32.mrb[0].mxu0
        %v498 = vadd.f32 %v376, %v497
        %v499 = vpop.f32.mrb[0].mxu0
        %v500 = vadd.f32 %v380, %v499
        %501 = vmatprep.mubr.f32.mxu0 %v294
        %502 = vmatmul.mubr.f32.gmra.mrb[0].mxu0 %v293
        %v503 = vpop.f32.mrb[0].mxu0
        %v504 = vadd.f32 %v376, %v503
        %v505 = vpop.f32.mrb[0].mxu0
        %v506 = vadd.f32 %v380, %v505
        %507 = vmatprep.mubr.f32.mxu0 %v296
        %508 = vmatmul.mubr.f32.gmra.mrb[0].mxu0 %v295
        %v509 = vpop.f32.mrb[0].mxu0
        %v510 = vadd.f32 %v376, %v509
        %v511 = vpop.f32.mrb[0].mxu0
        %v512 = vadd.f32 %v380, %v511
        %513 = vmatprep.mubr.f32.mxu0 %v298
        %514 = vmatmul.mubr.f32.gmra.mrb[0].mxu0 %v297
        %v515 = vpop.f32.mrb[0].mxu0
        %v516 = vadd.f32 %v376, %v515
        %v517 = vpop.f32.mrb[0].mxu0
        %v518 = vadd.f32 %v380, %v517
        %519 = vmatprep.mubr.f32.mxu0 %v300
        %520 = vmatmul.mubr.f32.gmra.mrb[0].mxu0 %v299
        %v521 = vpop.f32.mrb[0].mxu0
        %v522 = vadd.f32 %v376, %v521
        %v523 = vpop.f32.mrb[0].mxu0
        %v524 = vadd.f32 %v380, %v523
        %525 = vmatprep.mubr.f32.mxu0 %v302
        %526 = vmatmul.mubr.f32.gmra.mrb[0].mxu0 %v301
        %v527 = vpop.f32.mrb[0].mxu0
        %v528 = vadd.f32 %v376, %v527
        %v529 = vpop.f32.mrb[0].mxu0
        %v530 = vadd.f32 %v380, %v529
        %531 = vmatprep.mubr.f32.mxu0 %v304
        %532 = vmatmul.mubr.f32.gmra.mrb[0].mxu0 %v303
        %v533 = vpop.f32.mrb[0].mxu0
        %v534 = vadd.f32 %v376, %v533
        %v535 = vpop.f32.mrb[0].mxu0
        %v536 = vadd.f32 %v380, %v535
        %537 = vmatprep.mubr.f32.mxu0 %v306
        %538 = vmatmul.mubr.f32.gmra.mrb[0].mxu0 %v305
        %v539 = vpop.f32.mrb[0].mxu0
        %v540 = vadd.f32 %v376, %v539
        %v541 = vpop.f32.mrb[0].mxu0
        %v542 = vadd.f32 %v380, %v541
        %543 = vdwg.mxu0
        %v544 = vmul.f32 %v450, 0.01
        %v545 = vmul.f32 %v452, 0.01
        %v546 = vmul.f32 %v456, 0.01
        %v547 = vmul.f32 %v458, 0.01
        %v548 = vmul.f32 %v462, 0.01
        %v549 = vmul.f32 %v464, 0.01
        %v550 = vmul.f32 %v468, 0.01
        %v551 = vmul.f32 %v470, 0.01
        %v552 = vmul.f32 %v474, 0.01
        %v553 = vmul.f32 %v476, 0.01
        %v554 = vmul.f32 %v480, 0.01
        %v555 = vmul.f32 %v482, 0.01
        %v556 = vmul.f32 %v486, 0.01
        %v557 = vmul.f32 %v488, 0.01
        %v558 = vmul.f32 %v492, 0.01
        %v559 = vmul.f32 %v494, 0.01
        %v560 = vmul.f32 %v498, 0.01
        %v561 = vmul.f32 %v500, 0.01
        %v562 = vmul.f32 %v504, 0.01
        %v563 = vmul.f32 %v506, 0.01
        %v564 = vmul.f32 %v510, 0.01
        %v565 = vmul.f32 %v512, 0.01
        %v566 = vmul.f32 %v516, 0.01
        %v567 = vmul.f32 %v518, 0.01
        %v568 = vmul.f32 %v522, 0.01
        %v569 = vmul.f32 %v524, 0.01
        %v570 = vmul.f32 %v528, 0.01
        %v571 = vmul.f32 %v530, 0.01
        %v572 = vmul.f32 %v534, 0.01
        %v573 = vmul.f32 %v536, 0.01
        %v574 = vmul.f32 %v540, 0.01
        %v575 = vmul.f32 %v542, 0.01
        %v576 = vmax.f32 %v450, %v544
        %v577 = vmax.f32 %v452, %v545
        %v578 = vmax.f32 %v456, %v546
        %v579 = vmax.f32 %v458, %v547
        %v580 = vmax.f32 %v462, %v548
        %v581 = vmax.f32 %v464, %v549
        %v582 = vmax.f32 %v468, %v550
        %v583 = vmax.f32 %v470, %v551
        %v584 = vmax.f32 %v474, %v552
        %v585 = vmax.f32 %v476, %v553
        %v586 = vmax.f32 %v480, %v554
        %v587 = vmax.f32 %v482, %v555
        %v588 = vmax.f32 %v486, %v556
        %v589 = vmax.f32 %v488, %v557
        %v590 = vmax.f32 %v492, %v558
        %v591 = vmax.f32 %v494, %v559
        %v592 = vmax.f32 %v498, %v560
        %v593 = vmax.f32 %v500, %v561
        %v594 = vmax.f32 %v504, %v562
        %v595 = vmax.f32 %v506, %v563
        %v596 = vmax.f32 %v510, %v564
        %v597 = vmax.f32 %v512, %v565
        %v598 = vmax.f32 %v516, %v566
        %v599 = vmax.f32 %v518, %v567
        %v600 = vmax.f32 %v522, %v568
        %v601 = vmax.f32 %v524, %v569
        %v602 = vmax.f32 %v528, %v570
        %v603 = vmax.f32 %v530, %v571
        %v604 = vmax.f32 %v534, %v572
        %v605 = vmax.f32 %v536, %v573
        %v606 = vmax.f32 %v540, %v574
        %v607 = vmax.f32 %v542, %v575
        %v608 = vld [vmem:[#allocation7] sm:$0xff]
        %v609 = vld [vmem:[#allocation7 + $0x8] sm:$0xff]
        %v610 = vld [vmem:[#allocation7 + $0x10] sm:$0xff]
        %v611 = vld [vmem:[#allocation7 + $0x18] sm:$0xff]
        %v612 = vld [vmem:[#allocation7 + $0x20] sm:$0xff]
        %v613 = vld [vmem:[#allocation7 + $0x28] sm:$0xff]
        %v614 = vld [vmem:[#allocation7 + $0x30] sm:$0xff]
        %v615 = vld [vmem:[#allocation7 + $0x38] sm:$0xff]
        %v616 = vld [vmem:[#allocation7 + $0x40] sm:$0xff]
        %v617 = vld [vmem:[#allocation7 + $0x48] sm:$0xff]
        %v618 = vld [vmem:[#allocation7 + $0x50] sm:$0xff]
        %v619 = vld [vmem:[#allocation7 + $0x58] sm:$0xff]
        %v620 = vld [vmem:[#allocation7 + $0x60] sm:$0xff]
        %v621 = vld [vmem:[#allocation7 + $0x68] sm:$0xff]
        %v622 = vld [vmem:[#allocation7 + $0x70] sm:$0xff]
        %v623 = vld [vmem:[#allocation7 + $0x78] sm:$0xff]
        %v624 = vld [vmem:[#allocation7 + $0x80] sm:$0xff]
        %v625 = vld [vmem:[#allocation7 + $0x88] sm:$0xff]
        %v626 = vld [vmem:[#allocation7 + $0x90] sm:$0xff]
        %v627 = vld [vmem:[#allocation7 + $0x98] sm:$0xff]
        %v628 = vld [vmem:[#allocation7 + $0xa0] sm:$0xff]
        %v629 = vld [vmem:[#allocation7 + $0xa8] sm:$0xff]
        %v630 = vld [vmem:[#allocation7 + $0xb0] sm:$0xff]
        %v631 = vld [vmem:[#allocation7 + $0xb8] sm:$0xff]
        %v632 = vld [vmem:[#allocation7 + $0xc0] sm:$0xff]
        %v633 = vld [vmem:[#allocation7 + $0xc8] sm:$0xff]
        %v634 = vld [vmem:[#allocation7 + $0xd0] sm:$0xff]
        %v635 = vld [vmem:[#allocation7 + $0xd8] sm:$0xff]
        %v636 = vld [vmem:[#allocation7 + $0xe0] sm:$0xff]
        %v637 = vld [vmem:[#allocation7 + $0xe8] sm:$0xff]
        %v638 = vld [vmem:[#allocation7 + $0xf0] sm:$0xff]
        %v639 = vld [vmem:[#allocation7 + $0xf8] sm:$0xff]
        %v640 = vld [vmem:[#allocation7 + $0x100] sm:$0xff]
        %v641 = vld [vmem:[#allocation7 + $0x108] sm:$0xff]
        %v642 = vld [vmem:[#allocation7 + $0x110] sm:$0xff]
        %v643 = vld [vmem:[#allocation7 + $0x118] sm:$0xff]
        %v644 = vld [vmem:[#allocation7 + $0x120] sm:$0xff]
        %v645 = vld [vmem:[#allocation7 + $0x128] sm:$0xff]
        %v646 = vld [vmem:[#allocation7 + $0x130] sm:$0xff]
        %v647 = vld [vmem:[#allocation7 + $0x138] sm:$0xff]
        %v648 = vld [vmem:[#allocation7 + $0x140] sm:$0xff]
        %v649 = vld [vmem:[#allocation7 + $0x148] sm:$0xff]
        %v650 = vld [vmem:[#allocation7 + $0x150] sm:$0xff]
        %v651 = vld [vmem:[#allocation7 + $0x158] sm:$0xff]
        %v652 = vld [vmem:[#allocation7 + $0x160] sm:$0xff]
        %v653 = vld [vmem:[#allocation7 + $0x168] sm:$0xff]
        %v654 = vld [vmem:[#allocation7 + $0x170] sm:$0xff]
        %v655 = vld [vmem:[#allocation7 + $0x178] sm:$0xff]
        %v656 = vld [vmem:[#allocation7 + $0x180] sm:$0xff]
        %v657 = vld [vmem:[#allocation7 + $0x188] sm:$0xff]
        %v658 = vld [vmem:[#allocation7 + $0x190] sm:$0xff]
        %v659 = vld [vmem:[#allocation7 + $0x198] sm:$0xff]
        %v660 = vld [vmem:[#allocation7 + $0x1a0] sm:$0xff]
        %v661 = vld [vmem:[#allocation7 + $0x1a8] sm:$0xff]
        %v662 = vld [vmem:[#allocation7 + $0x1b0] sm:$0xff]
        %v663 = vld [vmem:[#allocation7 + $0x1b8] sm:$0xff]
        %v664 = vld [vmem:[#allocation7 + $0x1c0] sm:$0xff]
        %v665 = vld [vmem:[#allocation7 + $0x1c8] sm:$0xff]
        %v666 = vld [vmem:[#allocation7 + $0x1d0] sm:$0xff]
        %v667 = vld [vmem:[#allocation7 + $0x1d8] sm:$0xff]
        %v668 = vld [vmem:[#allocation7 + $0x1e0] sm:$0xff]
        %v669 = vld [vmem:[#allocation7 + $0x1e8] sm:$0xff]
        %v670 = vld [vmem:[#allocation7 + $0x1f0] sm:$0xff]
        %v671 = vld [vmem:[#allocation7 + $0x1f8] sm:$0xff]
        %v672 = vld [vmem:[%s4] sm:$0x3]
        %v674 = vlaneseq
        %v675 = vshrl.u32 %v674, 7
        %v676 = vsub.s32 0, %v675
        %v677 = vrot.slane %v672, %v676
        %v678 = vlaneseq
        %v679 = vshrl.u32 %v678, 7
        %v680 = vsub.s32 1, %v679
        %v681 = vrot.slane %v672, %v680
        %684 = vmatprep.subr.mxu0 %v609
        %685 = vmatpush1.msra.mxu0 %v608
        %686 = vmatprep.subr.mxu0 %v611
        %687 = vmatpush1.msra.mxu0 %v610
        %688 = vmatprep.subr.mxu0 %v613
        %689 = vmatpush1.msra.mxu0 %v612
        %690 = vmatprep.subr.mxu0 %v615
        %691 = vmatpush1.msra.mxu0 %v614
        %692 = vmatprep.subr.mxu0 %v617
        %693 = vmatpush1.msra.mxu0 %v616
        %694 = vmatprep.subr.mxu0 %v619
        %695 = vmatpush1.msra.mxu0 %v618
        %696 = vmatprep.subr.mxu0 %v621
        %697 = vmatpush1.msra.mxu0 %v620
        %698 = vmatprep.subr.mxu0 %v623
        %699 = vmatpush1.msra.mxu0 %v622
        %700 = vmatprep.subr.mxu0 %v625
        %701 = vmatpush1.msra.mxu0 %v624
        %702 = vmatprep.subr.mxu0 %v627
        %703 = vmatpush1.msra.mxu0 %v626
        %704 = vmatprep.subr.mxu0 %v629
        %705 = vmatpush1.msra.mxu0 %v628
        %706 = vmatprep.subr.mxu0 %v631
        %707 = vmatpush1.msra.mxu0 %v630
        %708 = vmatprep.subr.mxu0 %v633
        %709 = vmatpush1.msra.mxu0 %v632
        %710 = vmatprep.subr.mxu0 %v635
        %711 = vmatpush1.msra.mxu0 %v634
        %712 = vmatprep.subr.mxu0 %v637
        %713 = vmatpush1.msra.mxu0 %v636
        %714 = vmatprep.subr.mxu0 %v639
        %715 = vmatpush1.msra.mxu0 %v638
        %716 = vmatprep.subr.mxu0 %v641
        %717 = vmatpush1.msra.mxu0 %v640
        %718 = vmatprep.subr.mxu0 %v643
        %719 = vmatpush1.msra.mxu0 %v642
        %720 = vmatprep.subr.mxu0 %v645
        %721 = vmatpush1.msra.mxu0 %v644
        %722 = vmatprep.subr.mxu0 %v647
        %723 = vmatpush1.msra.mxu0 %v646
        %724 = vmatprep.subr.mxu0 %v649
        %725 = vmatpush1.msra.mxu0 %v648
        %726 = vmatprep.subr.mxu0 %v651
        %727 = vmatpush1.msra.mxu0 %v650
        %728 = vmatprep.subr.mxu0 %v653
        %729 = vmatpush1.msra.mxu0 %v652
        %730 = vmatprep.subr.mxu0 %v655
        %731 = vmatpush1.msra.mxu0 %v654
        %732 = vmatprep.subr.mxu0 %v657
        %733 = vmatpush1.msra.mxu0 %v656
        %734 = vmatprep.subr.mxu0 %v659
        %735 = vmatpush1.msra.mxu0 %v658
        %736 = vmatprep.subr.mxu0 %v661
        %737 = vmatpush1.msra.mxu0 %v660
        %738 = vmatprep.subr.mxu0 %v663
        %739 = vmatpush1.msra.mxu0 %v662
        %740 = vmatprep.subr.mxu0 %v665
        %741 = vmatpush1.msra.mxu0 %v664
        %742 = vmatprep.subr.mxu0 %v667
        %743 = vmatpush1.msra.mxu0 %v666
        %744 = vmatprep.subr.mxu0 %v669
        %745 = vmatpush1.msra.mxu0 %v668
        %746 = vmatprep.subr.mxu0 %v671
        %747 = vmatpush1.msra.mxu0 %v670
        %748 = vmatprep.mubr.f32.mxu0 %v577
        %749 = vmatmul.mubr.f32.gmra.mrb[0].mxu0 %v576
        %v750 = vpop.f32.mrb[0].mxu0
        %v751 = vadd.f32 %v677, %v750
        %v752 = vpop.f32.mrb[0].mxu0
        %v753 = vadd.f32 %v681, %v752
        %754 = vmatprep.mubr.f32.mxu0 %v579
        %755 = vmatmul.mubr.f32.gmra.mrb[0].mxu0 %v578
        %v756 = vpop.f32.mrb[0].mxu0
        %v757 = vadd.f32 %v677, %v756
        %v758 = vpop.f32.mrb[0].mxu0
        %v759 = vadd.f32 %v681, %v758
        %760 = vmatprep.mubr.f32.mxu0 %v581
        %761 = vmatmul.mubr.f32.gmra.mrb[0].mxu0 %v580
        %v762 = vpop.f32.mrb[0].mxu0
        %v763 = vadd.f32 %v677, %v762
        %v764 = vpop.f32.mrb[0].mxu0
        %v765 = vadd.f32 %v681, %v764
        %766 = vmatprep.mubr.f32.mxu0 %v583
        %767 = vmatmul.mubr.f32.gmra.mrb[0].mxu0 %v582
        %v768 = vpop.f32.mrb[0].mxu0
        %v769 = vadd.f32 %v677, %v768
        %v770 = vpop.f32.mrb[0].mxu0
        %v771 = vadd.f32 %v681, %v770
        %772 = vmatprep.mubr.f32.mxu0 %v585
        %773 = vmatmul.mubr.f32.gmra.mrb[0].mxu0 %v584
        %v774 = vpop.f32.mrb[0].mxu0
        %v775 = vadd.f32 %v677, %v774
        %v776 = vpop.f32.mrb[0].mxu0
        %v777 = vadd.f32 %v681, %v776
        %778 = vmatprep.mubr.f32.mxu0 %v587
        %779 = vmatmul.mubr.f32.gmra.mrb[0].mxu0 %v586
        %v780 = vpop.f32.mrb[0].mxu0
        %v781 = vadd.f32 %v677, %v780
        %v782 = vpop.f32.mrb[0].mxu0
        %v783 = vadd.f32 %v681, %v782
        %784 = vmatprep.mubr.f32.mxu0 %v589
        %785 = vmatmul.mubr.f32.gmra.mrb[0].mxu0 %v588
        %v786 = vpop.f32.mrb[0].mxu0
        %v787 = vadd.f32 %v677, %v786
        %v788 = vpop.f32.mrb[0].mxu0
        %v789 = vadd.f32 %v681, %v788
        %790 = vmatprep.mubr.f32.mxu0 %v591
        %791 = vmatmul.mubr.f32.gmra.mrb[0].mxu0 %v590
        %v792 = vpop.f32.mrb[0].mxu0
        %v793 = vadd.f32 %v677, %v792
        %v794 = vpop.f32.mrb[0].mxu0
        %v795 = vadd.f32 %v681, %v794
        %796 = vmatprep.mubr.f32.mxu0 %v593
        %797 = vmatmul.mubr.f32.gmra.mrb[0].mxu0 %v592
        %v798 = vpop.f32.mrb[0].mxu0
        %v799 = vadd.f32 %v677, %v798
        %v800 = vpop.f32.mrb[0].mxu0
        %v801 = vadd.f32 %v681, %v800
        %802 = vmatprep.mubr.f32.mxu0 %v595
        %803 = vmatmul.mubr.f32.gmra.mrb[0].mxu0 %v594
        %v804 = vpop.f32.mrb[0].mxu0
        %v805 = vadd.f32 %v677, %v804
        %v806 = vpop.f32.mrb[0].mxu0
        %v807 = vadd.f32 %v681, %v806
        %808 = vmatprep.mubr.f32.mxu0 %v597
        %809 = vmatmul.mubr.f32.gmra.mrb[0].mxu0 %v596
        %v810 = vpop.f32.mrb[0].mxu0
        %v811 = vadd.f32 %v677, %v810
        %v812 = vpop.f32.mrb[0].mxu0
        %v813 = vadd.f32 %v681, %v812
        %814 = vmatprep.mubr.f32.mxu0 %v599
        %815 = vmatmul.mubr.f32.gmra.mrb[0].mxu0 %v598
        %v816 = vpop.f32.mrb[0].mxu0
        %v817 = vadd.f32 %v677, %v816
        %v818 = vpop.f32.mrb[0].mxu0
        %v819 = vadd.f32 %v681, %v818
        %820 = vmatprep.mubr.f32.mxu0 %v601
        %821 = vmatmul.mubr.f32.gmra.mrb[0].mxu0 %v600
        %v822 = vpop.f32.mrb[0].mxu0
        %v823 = vadd.f32 %v677, %v822
        %v824 = vpop.f32.mrb[0].mxu0
        %v825 = vadd.f32 %v681, %v824
        %826 = vmatprep.mubr.f32.mxu0 %v603
        %827 = vmatmul.mubr.f32.gmra.mrb[0].mxu0 %v602
        %v828 = vpop.f32.mrb[0].mxu0
        %v829 = vadd.f32 %v677, %v828
        %v830 = vpop.f32.mrb[0].mxu0
        %v831 = vadd.f32 %v681, %v830
        %832 = vmatprep.mubr.f32.mxu0 %v605
        %833 = vmatmul.mubr.f32.gmra.mrb[0].mxu0 %v604
        %v834 = vpop.f32.mrb[0].mxu0
        %v835 = vadd.f32 %v677, %v834
        %v836 = vpop.f32.mrb[0].mxu0
        %v837 = vadd.f32 %v681, %v836
        %838 = vmatprep.mubr.f32.mxu0 %v607
        %839 = vmatmul.mubr.f32.gmra.mrb[0].mxu0 %v606
        %v840 = vpop.f32.mrb[0].mxu0
        %v841 = vadd.f32 %v677, %v840
        %v842 = vpop.f32.mrb[0].mxu0
        %v843 = vadd.f32 %v681, %v842
        %844 = vdwg.mxu0
        %v845 = vmax.f32 %v753, -20.0
        %v846 = vmax.f32 %v759, -20.0
        %v847 = vmax.f32 %v765, -20.0
        %v848 = vmax.f32 %v771, -20.0
        %v849 = vmax.f32 %v777, -20.0
        %v850 = vmax.f32 %v783, -20.0
        %v851 = vmax.f32 %v789, -20.0
        %v852 = vmax.f32 %v795, -20.0
        %v853 = vmax.f32 %v801, -20.0
        %v854 = vmax.f32 %v807, -20.0
        %v855 = vmax.f32 %v813, -20.0
        %v856 = vmax.f32 %v819, -20.0
        %v857 = vmax.f32 %v825, -20.0
        %v858 = vmax.f32 %v831, -20.0
        %v859 = vmax.f32 %v837, -20.0
        %v860 = vmax.f32 %v843, -20.0
        %v861 = vmin.f32 %v845, 2.0
        %v862 = vmin.f32 %v846, 2.0
        %v863 = vmin.f32 %v847, 2.0
        %v864 = vmin.f32 %v848, 2.0
        %v865 = vmin.f32 %v849, 2.0
        %v866 = vmin.f32 %v850, 2.0
        %v867 = vmin.f32 %v851, 2.0
        %v868 = vmin.f32 %v852, 2.0
        %v869 = vmin.f32 %v853, 2.0
        %v870 = vmin.f32 %v854, 2.0
        %v871 = vmin.f32 %v855, 2.0
        %v872 = vmin.f32 %v856, 2.0
        %v873 = vmin.f32 %v857, 2.0
        %v874 = vmin.f32 %v858, 2.0
        %v875 = vmin.f32 %v859, 2.0
        %v876 = vmin.f32 %v860, 2.0
        %v877 = vmul.f32 %v861, 1.442695
        %v878 = vpow.pop %v877
        %v879 = vmul.f32 %v862, 1.442695
        %v880 = vpow.pop %v879
        %v881 = vmul.f32 %v863, 1.442695
        %v882 = vpow.pop %v881
        %v883 = vmul.f32 %v864, 1.442695
        %v884 = vpow.pop %v883
        %v885 = vmul.f32 %v865, 1.442695
        %v886 = vpow.pop %v885
        %v887 = vmul.f32 %v866, 1.442695
        %v888 = vpow.pop %v887
        %v889 = vmul.f32 %v867, 1.442695
        %v890 = vpow.pop %v889
        %v891 = vmul.f32 %v868, 1.442695
        %v892 = vpow.pop %v891
        %v893 = vmul.f32 %v869, 1.442695
        %v894 = vpow.pop %v893
        %v895 = vmul.f32 %v870, 1.442695
        %v896 = vpow.pop %v895
        %v897 = vmul.f32 %v871, 1.442695
        %v898 = vpow.pop %v897
        %v899 = vmul.f32 %v872, 1.442695
        %v900 = vpow.pop %v899
        %v901 = vmul.f32 %v873, 1.442695
        %v902 = vpow.pop %v901
        %v903 = vmul.f32 %v874, 1.442695
        %v904 = vpow.pop %v903
        %v905 = vmul.f32 %v875, 1.442695
        %v906 = vpow.pop %v905
        %v907 = vmul.f32 %v876, 1.442695
        %v908 = vpow.pop %v907
        %909 = vst [vmem:[%s272] sm:$0xff] %v751
        %910 = vst [vmem:[%s272 + $0x8] sm:$0xff] %v878
        %911 = vst [vmem:[%s272 + $0x10] sm:$0xff] %v757
        %912 = vst [vmem:[%s272 + $0x18] sm:$0xff] %v880
        %913 = vst [vmem:[%s272 + $0x20] sm:$0xff] %v763
        %914 = vst [vmem:[%s272 + $0x28] sm:$0xff] %v882
        %915 = vst [vmem:[%s272 + $0x30] sm:$0xff] %v769
        %916 = vst [vmem:[%s272 + $0x38] sm:$0xff] %v884
        %917 = vst [vmem:[%s272 + $0x40] sm:$0xff] %v775
        %918 = vst [vmem:[%s272 + $0x48] sm:$0xff] %v886
        %919 = vst [vmem:[%s272 + $0x50] sm:$0xff] %v781
        %920 = vst [vmem:[%s272 + $0x58] sm:$0xff] %v888
        %921 = vst [vmem:[%s272 + $0x60] sm:$0xff] %v787
        %922 = vst [vmem:[%s272 + $0x68] sm:$0xff] %v890
        %923 = vst [vmem:[%s272 + $0x70] sm:$0xff] %v793
        %924 = vst [vmem:[%s272 + $0x78] sm:$0xff] %v892
        %925 = vst [vmem:[%s272 + $0x80] sm:$0xff] %v799
        %926 = vst [vmem:[%s272 + $0x88] sm:$0xff] %v894
        %927 = vst [vmem:[%s272 + $0x90] sm:$0xff] %v805
        %928 = vst [vmem:[%s272 + $0x98] sm:$0xff] %v896
        %929 = vst [vmem:[%s272 + $0xa0] sm:$0xff] %v811
        %930 = vst [vmem:[%s272 + $0xa8] sm:$0xff] %v898
        %931 = vst [vmem:[%s272 + $0xb0] sm:$0xff] %v817
        %932 = vst [vmem:[%s272 + $0xb8] sm:$0xff] %v900
        %933 = vst [vmem:[%s272 + $0xc0] sm:$0xff] %v823
        %934 = vst [vmem:[%s272 + $0xc8] sm:$0xff] %v902
        %935 = vst [vmem:[%s272 + $0xd0] sm:$0xff] %v829
        %936 = vst [vmem:[%s272 + $0xd8] sm:$0xff] %v904
        %937 = vst [vmem:[%s272 + $0xe0] sm:$0xff] %v835
        %938 = vst [vmem:[%s272 + $0xe8] sm:$0xff] %v906
        %939 = vst [vmem:[%s272 + $0xf0] sm:$0xff] %v841
        %940 = vst [vmem:[%s272 + $0xf8] sm:$0xff] %v908
        %s941 = sand.u32 %s141, 1
        %s942 = scalar_lea.sflag [#allocation4], %s941
        %s943 = sand.u32 %s141, 1
        %s944 = smul.addr %s943, 256
        %s945 = scalar_lea.vmem [#allocation8], %s944
        // Predicated region
        $region53: #{tpu_custom_call.1} parent=39 // pred_check
          %p946 = pneg %p151
        $region54: #{tpu_custom_call.1} parent=39 // pred_check_branch
          %948 = sbr.rel (%p946) target = $region56
        $region55: #{tpu_custom_call.1} parent=39 // pred_region
          %s949 = smul.u32 16, %s23
          %s951 = ssub.s32 4096, 4096
          %952 = vsyncadd %s942, %s951
          %s953 = smul.addr %s949, 2
          %s954 = smul.addr %s953, 128
          %s955 = scalar_lea.hbm %s5, %s954
          %s956 = sshll.u32 %s945, 4
          %s957 = int_to_ptr.vmem [resolvable:$true] %s956
          %962 = dma.vmem_to_hbm [thread:$0]  %s957, 4096, %s955, %s942, 256, 256, 16
        $region56: #{tpu_custom_call.1} parent=39 // pred_fallthru
          _
      $region40: #{tpu_custom_call.1} parent=5 // pred_fallthru
        _
      %p963 = scmp.le.s32.totalorder 2, %s18
      // Predicated region
      $region57: #{tpu_custom_call.1} parent=5 // pred_check
        %p964 = pneg %p963
      $region58: #{tpu_custom_call.1} parent=5 // pred_check_branch
        %966 = sbr.rel (%p964) target = $region60
      $region59: #{tpu_custom_call.1} parent=5 // pred_region
        %s967 = ssub.s32 %s18, 2
        // Predicated region
        $region61: #{tpu_custom_call.1} parent=59 // pred_check
          %p968 = pneg %p157
        $region62: #{tpu_custom_call.1} parent=59 // pred_check_branch
          %970 = sbr.rel (%p968) target = $region64
        $region63: #{tpu_custom_call.1} parent=59 // pred_region
          %s971 = sand.u32 %s142, 1
          %s972 = scalar_lea.sflag [#allocation4], %s971
          %s973 = sand.u32 %s142, 1
          %s974 = smul.addr %s973, 256
          %s975 = scalar_lea.vmem [#allocation8], %s974
          %976 = dma.done %s972, 4096
        $region64: #{tpu_custom_call.1} parent=59 // pred_fallthru
          _
      $region60: #{tpu_custom_call.1} parent=5 // pred_fallthru
        _
    $region6: #{tpu_custom_call.1} parent=1 // loop_footer
      %s22 = sadd.s32 1, %s18
    $region7: #{tpu_custom_call.1} parent=1 // loop_footer_branch
      %17 = sbr.rel target = $region3
    $region8: #{tpu_custom_call.1} parent=1 // loop_exit
      _
    %977 = vsyncpa [#allocation3], 1
    %s978 = scalar_lea.sflag [#allocation3], 1
    %979 = vsyncpa %s978, 1
    %980 = vsyncpa [#allocation6], 1
    %981 = vsyncpa [#allocation4], 1
    %s982 = scalar_lea.sflag [#allocation4], 1
    %983 = vsyncpa %s982, 1

</llo_original>
